<compile_context>
chip_gen: v7x
topology: tpu7x:2x2x1
jax: 0.10.0
libtpu: 0.0.40
codegen_flags: <defaults>
</compile_context>

<pallas_src>
import jax
import jax.numpy as jnp
from jax.experimental import pallas as pl
from jax.experimental.pallas import tpu as pltpu

# ---------------- synthetic obsConstants(numDrones=2) ----------------
NUM_DRONES = 2
WALL_TYPES = 3
WEAPON_TYPES = 4
WEAPON_EMB_DIMS = 2
CNN_CHANNELS = 64
ENCODER_OUT = 256
FLOATING_WALL_OUT = 128
ACTION_DIM = 4                      # env.single_action_space.shape[0] (continuous)

MAP_ROWS = 11
MAP_COLS = 11
MAP_OBS_SIZE = MAP_ROWS * MAP_COLS                                  # packed uint8 bytes
MAP_IN_CHANNELS = (WALL_TYPES + 1) + 1 + 1 + (NUM_DRONES + 1)       # = 9

NUM_NEAR_WALL = 8
NEAR_WALL_POS = 2
NUM_FLOATING_WALL = 6
FLOATING_WALL_INFO = 6
NUM_PICKUP = 12
PICKUP_POS = 2
NUM_PROJ = 20
PROJ_INFO = 5
ENEMY_DRONE_OBS = 16
DRONE_OBS = 20
MISC_OBS = 9

# scalar-obs offsets (float32 units)
NEAR_WALL_TYPES_OFF = 0
NEAR_WALL_POS_OFF = NEAR_WALL_TYPES_OFF + NUM_NEAR_WALL                       # 8
FLOATING_WALL_TYPES_OFF = NEAR_WALL_POS_OFF + NUM_NEAR_WALL * NEAR_WALL_POS   # 24
FLOATING_WALL_INFO_OFF = FLOATING_WALL_TYPES_OFF + NUM_FLOATING_WALL          # 30
PICKUP_TYPES_OFF = FLOATING_WALL_INFO_OFF + NUM_FLOATING_WALL * FLOATING_WALL_INFO  # 66
PICKUP_POS_OFF = PICKUP_TYPES_OFF + NUM_PICKUP                                # 78
PROJ_TYPES_OFF = PICKUP_POS_OFF + NUM_PICKUP * PICKUP_POS                     # 102
PROJ_POS_OFF = PROJ_TYPES_OFF + NUM_PROJ                                      # 122
ENEMY_DRONE_OFF = PROJ_POS_OFF + NUM_PROJ * PROJ_INFO                         # 222
DRONE_OFF = ENEMY_DRONE_OFF + (NUM_DRONES - 1) + (NUM_DRONES - 1) * (ENEMY_DRONE_OBS - 1)  # 238
MISC_OFF = DRONE_OFF + 1 + (DRONE_OBS - 1)                                    # 258
SCALAR_OBS_SIZE = MISC_OFF + MISC_OBS                                         # 267
SCALAR_OBS_BYTES = SCALAR_OBS_SIZE * 4
OBS_BYTES = MAP_OBS_SIZE + SCALAR_OBS_BYTES                                   # 1189

# CNN geometry: conv1 k=5 s=3 on 11x11 -> 3x3 ; conv2 k=3 s=1 on 3x3 -> 1x1
CONV1_K = 5
CONV1_STRIDE = 3
CONV1_OUT_HW = (MAP_ROWS - CONV1_K) // CONV1_STRIDE + 1          # 3
N_POS = CONV1_OUT_HW * CONV1_OUT_HW                              # 9
CNN_OUT = CNN_CHANNELS                                           # conv2 output is 1x1x64

KC1_RAW = CONV1_K * CONV1_K * MAP_IN_CHANNELS                    # 225
KC1 = 256                                                        # per-position K, lane padded
KC2 = N_POS * CNN_CHANNELS                                       # 576
H1_SCRATCH_W = (N_POS - 1) * CNN_CHANNELS                        # 512 (positions 0..7)

FW_ENT_IN = WALL_TYPES + 1 + FLOATING_WALL_INFO                  # 10
FW_ENT_K = 16                                                    # padded per-entity K
FW_PACK = NUM_FLOATING_WALL * FW_ENT_K                           # 96
FW_IN_PAD = 128                                                  # lane-dense fw input block
FW_BIG_N = NUM_FLOATING_WALL * FLOATING_WALL_OUT                 # 768

NEAR_WALL_FEAT = NUM_NEAR_WALL * (WALL_TYPES + NEAR_WALL_POS)                   # 40
PICKUP_FEAT = NUM_PICKUP * (WEAPON_EMB_DIMS + PICKUP_POS)                       # 48
PROJ_FEAT = NUM_PROJ * (WEAPON_EMB_DIMS + (NUM_DRONES + 1) + (PROJ_INFO - 1))   # 180
DRONE_FEAT = ((NUM_DRONES - 1) * (WEAPON_EMB_DIMS + ENEMY_DRONE_OBS - 1)
              + (WEAPON_EMB_DIMS + DRONE_OBS - 1))                              # 38
REST_SIZE = NEAR_WALL_FEAT + PICKUP_FEAT + PROJ_FEAT + DRONE_FEAT + MISC_OBS    # 315
REST_PAD = 384

FEATURES_SIZE = 507
assert CNN_OUT + NEAR_WALL_FEAT + FLOATING_WALL_OUT + PICKUP_FEAT + PROJ_FEAT + DRONE_FEAT + MISC_OBS == FEATURES_SIZE
assert REST_SIZE == 315

HEAD_PAD = 128          # fused actor(4) + critic(1) head, padded to a lane-dense 128
BATCH_TILE = 256        # max rows per grid step

_WDT = jnp.bfloat16     # MXU operand dtype; accumulation / bias / ReLU are f32


# ---------------- fused Pallas kernel ----------------
def _policy_fused_kernel(
    patches_ref, fw_ref, rest_ref,
    c1w_ref, c1b_ref, c2w_ref, c2b_ref,
    fww_ref, fwb_ref,
    encm_ref, encf_ref, encr_ref, encb_ref,
    hw_ref, hb_ref,
    out_ref,
    h1_ref,
):
    f32 = jnp.float32

    # ---- stage 1: conv1 (k=5,s=3) -- 9 independent K=256 matmuls ----
    # Positions 0..7 are relu'd and written pairwise (128-lane-aligned stores)
    # into the VMEM scratch; position 8 stays in registers and is consumed by
    # the conv2 stage directly.  No serial accumulator across conv1 positions.
    c1w = c1w_ref[...]
    c1b = c1b_ref[...]

    def conv1_pos(p):
        xp = patches_ref[:, p * KC1:(p + 1) * KC1]                   # (tb, 256) bf16
        return jnp.maximum(
            jnp.dot(xp, c1w, preferred_element_type=f32) + c1b, 0.0)  # (tb, 64) f32

    for q in range(N_POS // 2):                                       # pairs (0,1)..(6,7)
        pair = jnp.concatenate([conv1_pos(2 * q), conv1_pos(2 * q + 1)], axis=-1)
        h1_ref[:, 2 * q * CNN_CHANNELS:2 * (q + 1) * CNN_CHANNELS] = pair
    h1_last = conv1_pos(N_POS - 1)                                    # (tb, 64) f32

    # ---- stage 2: conv2 as ONE merged K=576 matmul (3 lane-aligned K chunks) ----
    acc2 = jnp.dot(h1_last.astype(_WDT), c2w_ref[H1_SCRATCH_W:, :],
                   preferred_element_type=f32)
    for k0 in range(0, H1_SCRATCH_W, 256):
        acc2 = acc2 + jnp.dot(h1_ref[:, k0:k0 + 256].astype(_WDT),
                              c2w_ref[k0:k0 + 256, :],
                              preferred_element_type=f32)
    map_feat = jnp.maximum(acc2 + c2b_ref[...], 0.0)                  # (tb, 64)

    # ---- floating walls: ONE block-diagonal matmul, then max over entities ----
    fh = jnp.maximum(
        jnp.dot(fw_ref[...], fww_ref[...], preferred_element_type=f32)
        + fwb_ref[...], 0.0)                                          # (tb, 6*128)
    fw_feat = fh[:, :FLOATING_WALL_OUT]
    for e in range(1, NUM_FLOATING_WALL):                             # lane-tile-aligned slices
        fw_feat = jnp.maximum(
            fw_feat, fh[:, e * FLOATING_WALL_OUT:(e + 1) * FLOATING_WALL_OUT])

    # ---- encoder: hidden = relu(map@Wm + fw@Wf + rest@Wr + b) (row-split weight) ----
    acc = jnp.dot(rest_ref[...], encr_ref[...], preferred_element_type=f32)
    acc = acc + jnp.dot(map_feat.astype(_WDT), encm_ref[...], preferred_element_type=f32)
    acc = acc + jnp.dot(fw_feat.astype(_WDT), encf_ref[...], preferred_element_type=f32)
    hidden = jnp.maximum(acc + encb_ref[...], 0.0)                    # (tb, 256)

    # ---- fused actor-mean + critic head (lane-dense 128-wide output) ----
    out_ref[...] = (jnp.dot(hidden.astype(_WDT), hw_ref[...],
                            preferred_element_type=f32) + hb_ref[...])


def _round_up(x, m):
    return ((x + m - 1) // m) * m


def _batch_tiling(batch):
    # Small batches: one full block (grid of 1).
    if batch <= 128:
        bp = max(16, _round_up(batch, 16))
        return bp, bp
    # Larger batches: guarantee >= 2 grid steps so the "parallel" batch axis
    # shards across both v7x TensorCores; tile capped at BATCH_TILE rows.
    tb = min(BATCH_TILE, _round_up(-(-batch // 2), 16))
    bp = _round_up(batch, tb)
    return bp, tb


def _fused_policy_net(patches, fw_in, rest, params, tb):
    bp = patches.shape[0]
    grid = (bp // tb,)

    def rows(width):
        return pl.BlockSpec((tb, width), lambda i: (i, 0))

    def whole(arr):                    # all weights / biases are 2-D, kept resident
        return pl.BlockSpec(arr.shape, lambda i: (0, 0))

    p = params
    weights = (p["conv1_w"], p["conv1_b"], p["conv2_w"], p["conv2_b"],
               p["fw_w_big"], p["fw_b_big"],
               p["enc_w_map"], p["enc_w_fw"], p["enc_w_rest"], p["enc_b"],
               p["head_w"], p["head_b"])

    # Advisory cost hint so XLA schedules the unpack/one-hot/im2col prologue
    # around the kernel instead of treating it as a black box.
    macs_per_row = (N_POS * KC1 * CNN_CHANNELS + KC2 * CNN_CHANNELS
                    + FW_IN_PAD * FW_BIG_N
                    + CNN_OUT * ENCODER_OUT + FLOATING_WALL_OUT * ENCODER_OUT
                    + REST_PAD * ENCODER_OUT + ENCODER_OUT * HEAD_PAD)
    weight_bytes = sum(int(w.size) * int(w.dtype.itemsize) for w in weights)
    bytes_per_row = (N_POS * KC1 + FW_IN_PAD + REST_PAD) * 2 + HEAD_PAD * 4
    cost = pl.CostEstimate(flops=2 * macs_per_row * bp, transcendentals=0,
                           bytes_accessed=bytes_per_row * bp + weight_bytes)

    return pl.pallas_call(
        _policy_fused_kernel,
        out_shape=jax.ShapeDtypeStruct((bp, HEAD_PAD), jnp.float32),
        grid=grid,
        in_specs=([rows(patches.shape[1]), rows(fw_in.shape[1]), rows(rest.shape[1])]
                  + [whole(w) for w in weights]),
        out_specs=rows(HEAD_PAD),
        scratch_shapes=[pltpu.VMEM((tb, H1_SCRATCH_W), jnp.float32)],
        compiler_params=pltpu.CompilerParams(
            dimension_semantics=("parallel",),
            # Footprint at tb=256 is ~5 MiB; 32 MiB is safe on v5e/v6e/v7x and
            # leaves the pipeline double-buffering plenty of headroom.
            vmem_limit_bytes=32 * 1024 * 1024),
        cost_estimate=cost,
    )(patches, fw_in, rest, *weights)


# ---------------- parameters ----------------
def init_params(key):
    ks = jax.random.split(key, 9)

    def rnd(k, shape, scale):
        return jax.random.normal(k, shape, jnp.float32) * scale

    p = {}
    p["emb"] = rnd(ks[0], (WEAPON_TYPES, WEAPON_EMB_DIMS), 1.0)

    # conv1: HWIO (5,5,9,64) flattened to (225,64); K zero-padded 225 -> 256.
    w1 = rnd(ks[1], (KC1_RAW, CNN_CHANNELS), 0.08)
    p["conv1_w"] = jnp.zeros((KC1, CNN_CHANNELS), jnp.float32).at[:KC1_RAW].set(w1).astype(_WDT)
    p["conv1_b"] = jnp.zeros((1, CNN_CHANNELS), jnp.float32)

    # conv2: HWIO (3,3,64,64) flattened to (576,64); rows p*64:(p+1)*64 = tap p.
    p["conv2_w"] = rnd(ks[2], (KC2, CNN_CHANNELS), 0.04).astype(_WDT)
    p["conv2_b"] = jnp.zeros((1, CNN_CHANNELS), jnp.float32)

    # floating-wall encoder: (10,128), K padded to 16, block-diagonal over 6 entities,
    # input padded to a full 128-lane tile (rows 96..127 are zero).
    fw_w = rnd(ks[3], (FW_ENT_IN, FLOATING_WALL_OUT), 1.0 / FW_ENT_IN ** 0.5)
    fw_big = jnp.zeros((FW_IN_PAD, FW_BIG_N), jnp.float32)
    for e in range(NUM_FLOATING_WALL):
        fw_big = fw_big.at[e * FW_ENT_K:e * FW_ENT_K + FW_ENT_IN,
                           e * FLOATING_WALL_OUT:(e + 1) * FLOATING_WALL_OUT].set(fw_w)
    p["fw_w_big"] = fw_big.astype(_WDT)
    p["fw_b_big"] = jnp.zeros((1, FW_BIG_N), jnp.float32)

    # encoder (507 -> 256), row-split by feature group: map / floating-wall / rest.
    esc = 1.0 / FEATURES_SIZE ** 0.5
    p["enc_w_map"] = rnd(ks[4], (CNN_OUT, ENCODER_OUT), esc).astype(_WDT)
    p["enc_w_fw"] = rnd(ks[5], (FLOATING_WALL_OUT, ENCODER_OUT), esc).astype(_WDT)
    wr = rnd(ks[6], (REST_SIZE, ENCODER_OUT), esc)
    p["enc_w_rest"] = jnp.zeros((REST_PAD, ENCODER_OUT), jnp.float32).at[:REST_SIZE].set(wr).astype(_WDT)
    p["enc_b"] = jnp.zeros((1, ENCODER_OUT), jnp.float32)

    # fused actor-mean (cols 0:4) + critic (col 4) head, zero-padded to 128 lanes.
    aw = rnd(ks[7], (ENCODER_OUT, ACTION_DIM), 0.01)
    cw = rnd(ks[8], (ENCODER_OUT, 1), 1.0 / ENCODER_OUT ** 0.5)
    hw = jnp.zeros((ENCODER_OUT, HEAD_PAD), jnp.float32)
    hw = hw.at[:, :ACTION_DIM].set(aw).at[:, ACTION_DIM:ACTION_DIM + 1].set(cw)
    p["head_w"] = hw.astype(_WDT)
    p["head_b"] = jnp.zeros((1, HEAD_PAD), jnp.float32)

    p["actor_logstd"] = jnp.zeros((1, ACTION_DIM), jnp.float32)
    return p


# ---------------- forward pass (feature assembly in XLA, network in one Pallas kernel) ----------------
def unpack_map(obs_u8):
    bp = obs_u8.shape[0]
    map_bytes = obs_u8[:, :MAP_OBS_SIZE].reshape(bp, -1, 1)
    mask = jnp.array([96, 16, 8, 7], dtype=jnp.uint8)
    shift = jnp.array([5, 4, 3, 0], dtype=jnp.uint8)
    unpacked = (map_bytes & mask) >> shift                 # (bp, MAP_OBS_SIZE, 4)
    return jnp.transpose(unpacked, (0, 2, 1)).reshape(bp, 4, MAP_ROWS, MAP_COLS)


def _im2col_conv1(map_nhwc):
    # (bp, 11, 11, 9) -> (bp, 9, 225) patches, flattened in (ki, kj, c) order.
    bp = map_nhwc.shape[0]
    c = map_nhwc.shape[-1]
    o, k, s = CONV1_OUT_HW, CONV1_K, CONV1_STRIDE
    idx = (jnp.arange(o)[:, None] * s + jnp.arange(k)[None, :]).reshape(-1)   # (15,)
    x = jnp.take(map_nhwc, idx, axis=1)                     # (bp, 15, 11, c)
    x = jnp.take(x, idx, axis=2)                            # (bp, 15, 15, c)
    x = x.reshape(bp, o, k, o, k, c)
    x = jnp.transpose(x, (0, 1, 3, 2, 4, 5))                # (bp, o, o, k, k, c)
    return x.reshape(bp, o * o, k * k * c)                  # (bp, 9, 225)


def policy_forward(params, obs):
    B = obs.shape[0]
    bp, tb = _batch_tiling(B)
    if bp != B:
        obs = jnp.pad(obs, ((0, bp - B), (0, 0)))           # padded rows are harmless zeros

    # ---- map branch: unpack packed bytes, one-hot, im2col (fused under jit) ----
    m = unpack_map(obs)                                                          # (bp,4,R,C) uint8
    wall_oh = jax.nn.one_hot(m[:, 0].astype(jnp.int32), WALL_TYPES + 1, dtype=jnp.float32)
    float_wall = m[:, 1].astype(jnp.float32)[..., None]
    pickup_map = m[:, 2].astype(jnp.float32)[..., None]
    drone_oh = jax.nn.one_hot(m[:, 3].astype(jnp.int32), NUM_DRONES + 1, dtype=jnp.float32)
    map_nhwc = jnp.concatenate([wall_oh, float_wall, pickup_map, drone_oh], axis=-1)  # (bp,R,C,9)
    patches = _im2col_conv1(map_nhwc)                                            # (bp, 9, 225)
    patches = jnp.pad(patches, ((0, 0), (0, 0), (0, KC1 - KC1_RAW)))             # K 225 -> 256
    patches = patches.reshape(bp, N_POS * KC1).astype(_WDT)                      # (bp, 2304)

    # ---- scalar obs: byte view -> float32 (nativize for a pure-f32 dtype) ----
    scalar_bytes = obs[:, MAP_OBS_SIZE:].reshape(bp, SCALAR_OBS_SIZE, 4)
    scalar = jax.lax.bitcast_convert_type(scalar_bytes, jnp.float32)             # (bp, 267)

    # near walls (40)
    nw_types = jax.nn.one_hot(
        scalar[:, NEAR_WALL_TYPES_OFF:NEAR_WALL_POS_OFF].astype(jnp.int32),
        WALL_TYPES, dtype=jnp.float32)
    nw_pos = scalar[:, NEAR_WALL_POS_OFF:FLOATING_WALL_TYPES_OFF].reshape(
        bp, NUM_NEAR_WALL, NEAR_WALL_POS)
    near_walls = jnp.concatenate([nw_types, nw_pos], axis=-1).reshape(bp, -1)

    # floating-wall encoder input -> (bp, 128): per-entity features zero-padded 10 -> 16,
    # then the whole block padded 96 -> 128 lanes.
    fw_types = jax.nn.one_hot(
        scalar[:, FLOATING_WALL_TYPES_OFF:FLOATING_WALL_INFO_OFF].astype(jnp.int32),
        WALL_TYPES + 1, dtype=jnp.float32)
    fw_info = scalar[:, FLOATING_WALL_INFO_OFF:PICKUP_TYPES_OFF].reshape(
        bp, NUM_FLOATING_WALL, FLOATING_WALL_INFO)
    fw_cat = jnp.concatenate([fw_types, fw_info], axis=-1)                       # (bp,6,10)
    fw_in = jnp.pad(fw_cat, ((0, 0), (0, 0), (0, FW_ENT_K - FW_ENT_IN)))
    fw_in = fw_in.reshape(bp, FW_PACK)
    fw_in = jnp.pad(fw_in, ((0, 0), (0, FW_IN_PAD - FW_PACK))).astype(_WDT)      # (bp, 128)

    # weapon pickups (48)
    pk_types = jnp.take(params["emb"],
                        scalar[:, PICKUP_TYPES_OFF:PICKUP_POS_OFF].astype(jnp.int32), axis=0)
    pk_pos = scalar[:, PICKUP_POS_OFF:PROJ_TYPES_OFF].reshape(bp, NUM_PICKUP, PICKUP_POS)
    pickups = jnp.concatenate([pk_types, pk_pos], axis=-1).reshape(bp, -1)

    # projectiles (180)
    pr_types = jnp.take(params["emb"],
                        scalar[:, PROJ_TYPES_OFF:PROJ_TYPES_OFF + NUM_PROJ].astype(jnp.int32),
                        axis=0)
    pr_info = scalar[:, PROJ_POS_OFF:ENEMY_DRONE_OFF].reshape(bp, NUM_PROJ, PROJ_INFO)
    pr_drone_oh = jax.nn.one_hot(pr_info[:, :, 0].astype(jnp.int32),
                                 NUM_DRONES + 1, dtype=jnp.float32)
    projectiles = jnp.concatenate([pr_types, pr_drone_oh, pr_info[:, :, 1:]],
                                  axis=-1).reshape(bp, -1)

    # drones (38)
    en_weapon = jnp.take(
        params["emb"],
        scalar[:, ENEMY_DRONE_OFF:ENEMY_DRONE_OFF + NUM_DRONES - 1].astype(jnp.int32), axis=0)
    en_info = scalar[:, ENEMY_DRONE_OFF + NUM_DRONES - 1:DRONE_OFF].reshape(
        bp, NUM_DRONES - 1, ENEMY_DRONE_OBS - 1)
    enemy = jnp.concatenate([en_weapon, en_info], axis=-1).reshape(bp, -1)
    dr_weapon = jnp.take(params["emb"],
                         scalar[:, DRONE_OFF:DRONE_OFF + 1].astype(jnp.int32),
                         axis=0).reshape(bp, WEAPON_EMB_DIMS)
    dr_info = scalar[:, DRONE_OFF + 1:MISC_OFF]
    drone = jnp.concatenate([dr_weapon, dr_info], axis=-1)
    all_drones = jnp.concatenate([enemy, drone], axis=1)

    misc = scalar[:, MISC_OFF:]                                                  # (bp, 9)

    rest = jnp.concatenate([near_walls, pickups, projectiles, all_drones, misc], axis=-1)
    rest = jnp.pad(rest, ((0, 0), (0, REST_PAD - REST_SIZE))).astype(_WDT)       # (bp, 384)

    # ---- fused network: convs + floating-wall encoder + encoder + heads in one kernel ----
    head_out = _fused_policy_net(patches, fw_in, rest, params, tb)               # (bp, 128) f32

    action_mean = head_out[:B, :ACTION_DIM]
    value = head_out[:B, ACTION_DIM:ACTION_DIM + 1]
    # std does not depend on hidden: computed once and broadcast outside the kernel.
    action_std = jnp.broadcast_to(jnp.exp(params["actor_logstd"]), action_mean.shape)
    return action_mean, action_std, value


# ---------------- deterministic example observations ----------------
def make_example_obs(key, B):
    ks = jax.random.split(key, 18)
    wall_t = jax.random.randint(ks[0], (B, MAP_OBS_SIZE), 0, WALL_TYPES + 1, dtype=jnp.int32)
    fwall = jax.random.randint(ks[1], (B, MAP_OBS_SIZE), 0, 2, dtype=jnp.int32)
    pick = jax.random.randint(ks[2], (B, MAP_OBS_SIZE), 0, 2, dtype=jnp.int32)
    didx = jax.random.randint(ks[3], (B, MAP_OBS_SIZE), 0, NUM_DRONES + 1, dtype=jnp.int32)
    map_bytes = ((wall_t << 5) | (fwall << 4) | (pick << 3) | didx).astype(jnp.uint8)

    def u(k, shape):
        return jax.random.uniform(k, shape, jnp.float32, -1.0, 1.0)

    def ints(k, shape, hi):
        return jax.random.randint(k, shape, 0, hi, dtype=jnp.int32).astype(jnp.float32)

    parts = [
        ints(ks[4], (B, NUM_NEAR_WALL), WALL_TYPES),
        u(ks[5], (B, NUM_NEAR_WALL * NEAR_WALL_POS)),
        ints(ks[6], (B, NUM_FLOATING_WALL), WALL_TYPES + 1),
        u(ks[7], (B, NUM_FLOATING_WALL * FLOATING_WALL_INFO)),
        ints(ks[8], (B, NUM_PICKUP), WEAPON_TYPES),
        u(ks[9], (B, NUM_PICKUP * PICKUP_POS)),
        ints(ks[10], (B, NUM_PROJ), WEAPON_TYPES),
        jnp.concatenate([
            ints(ks[11], (B, NUM_PROJ, 1), NUM_DRONES + 1),
            u(ks[12], (B, NUM_PROJ, PROJ_INFO - 1)),
        ], axis=-1).reshape(B, NUM_PROJ * PROJ_INFO),
        ints(ks[13], (B, NUM_DRONES - 1), WEAPON_TYPES),
        u(ks[14], (B, (NUM_DRONES - 1) * (ENEMY_DRONE_OBS - 1))),
        ints(ks[15], (B, 1), WEAPON_TYPES),
        u(ks[16], (B, DRONE_OBS - 1)),
        u(ks[17], (B, MISC_OBS)),
    ]
    scalar = jnp.concatenate(parts, axis=-1)
    assert scalar.shape == (B, SCALAR_OBS_SIZE)
    scalar_bytes = jax.lax.bitcast_convert_type(scalar, jnp.uint8).reshape(B, SCALAR_OBS_BYTES)
    return jnp.concatenate([map_bytes, scalar_bytes], axis=-1)             # (B, 1189) uint8


if __name__ == "__main__":
    key = jax.random.PRNGKey(0)
    pkey, okey = jax.random.split(key)
    params = init_params(pkey)

    B = 2
    obs = make_example_obs(okey, B)
    assert obs.shape == (B, OBS_BYTES) and obs.dtype == jnp.uint8

    fwd = jax.jit(policy_forward)
    mean, std, value = fwd(params, obs)
    jax.block_until_ready((mean, std, value))

    assert mean.shape == (B, ACTION_DIM)
    assert std.shape == (B, ACTION_DIM)
    assert value.shape == (B, 1)
    assert bool(jnp.all(jnp.isfinite(mean))) and bool(jnp.all(jnp.isfinite(value)))
    assert bool(jnp.all(std > 0))
    print("KERNEL_OK")
</pallas_src>

<mosaic_0001>
module attributes {stable_mosaic.version = 11 : i64} {
  func.func @_policy_fused_kernel(%arg0: i32, %arg1: memref<16x2304xbf16, #tpu.memory_space<vmem>>, %arg2: memref<16x128xbf16, #tpu.memory_space<vmem>>, %arg3: memref<16x384xbf16, #tpu.memory_space<vmem>>, %arg4: memref<256x64xbf16, #tpu.memory_space<vmem>>, %arg5: memref<1x64xf32, #tpu.memory_space<vmem>>, %arg6: memref<576x64xbf16, #tpu.memory_space<vmem>>, %arg7: memref<1x64xf32, #tpu.memory_space<vmem>>, %arg8: memref<128x768xbf16, #tpu.memory_space<vmem>>, %arg9: memref<1x768xf32, #tpu.memory_space<vmem>>, %arg10: memref<64x256xbf16, #tpu.memory_space<vmem>>, %arg11: memref<128x256xbf16, #tpu.memory_space<vmem>>, %arg12: memref<384x256xbf16, #tpu.memory_space<vmem>>, %arg13: memref<1x256xf32, #tpu.memory_space<vmem>>, %arg14: memref<256x128xbf16, #tpu.memory_space<vmem>>, %arg15: memref<1x128xf32, #tpu.memory_space<vmem>>, %arg16: memref<16x128xf32, #tpu.memory_space<vmem>>, %arg17: memref<16x512xf32, #tpu.memory_space<vmem>>) attributes {dimension_semantics = [#tpu.dimension_semantics<parallel>], iteration_bounds = array<i64: 1>, scalar_prefetch = 0 : i64, scratch_operands = 1 : i64, tpu.core_type = #tpu.core_type<tc>, window_params = [{transform_indices = @transform_0, window_bounds = array<i64: 16, 2304>}, {transform_indices = @transform_1, window_bounds = array<i64: 16, 128>}, {transform_indices = @transform_2, window_bounds = array<i64: 16, 384>}, {pipeline_mode = #tpu.pipeline_mode<synchronous>, transform_indices = @transform_3, window_bounds = array<i64: 256, 64>}, {pipeline_mode = #tpu.pipeline_mode<synchronous>, transform_indices = @transform_4, window_bounds = array<i64: 1, 64>}, {pipeline_mode = #tpu.pipeline_mode<synchronous>, transform_indices = @transform_5, window_bounds = array<i64: 576, 64>}, {pipeline_mode = #tpu.pipeline_mode<synchronous>, transform_indices = @transform_6, window_bounds = array<i64: 1, 64>}, {pipeline_mode = #tpu.pipeline_mode<synchronous>, transform_indices = @transform_7, window_bounds = array<i64: 128, 768>}, {pipeline_mode = #tpu.pipeline_mode<synchronous>, transform_indices = @transform_8, window_bounds = array<i64: 1, 768>}, {pipeline_mode = #tpu.pipeline_mode<synchronous>, transform_indices = @transform_9, window_bounds = array<i64: 64, 256>}, {pipeline_mode = #tpu.pipeline_mode<synchronous>, transform_indices = @transform_10, window_bounds = array<i64: 128, 256>}, {pipeline_mode = #tpu.pipeline_mode<synchronous>, transform_indices = @transform_11, window_bounds = array<i64: 384, 256>}, {pipeline_mode = #tpu.pipeline_mode<synchronous>, transform_indices = @transform_12, window_bounds = array<i64: 1, 256>}, {pipeline_mode = #tpu.pipeline_mode<synchronous>, transform_indices = @transform_13, window_bounds = array<i64: 256, 128>}, {pipeline_mode = #tpu.pipeline_mode<synchronous>, transform_indices = @transform_14, window_bounds = array<i64: 1, 128>}, {transform_indices = @transform_15, window_bounds = array<i64: 16, 128>}]} {
    %c0 = arith.constant 0 : index
    %c0_0 = arith.constant 0 : index
    %0 = vector.load %arg4[%c0, %c0_0] : memref<256x64xbf16, #tpu.memory_space<vmem>>, vector<256x64xbf16>
    %c0_1 = arith.constant 0 : index
    %c0_2 = arith.constant 0 : index
    %1 = vector.load %arg5[%c0_1, %c0_2] : memref<1x64xf32, #tpu.memory_space<vmem>>, vector<1x64xf32>
    %c0_3 = arith.constant 0 : index
    %c0_4 = arith.constant 0 : index
    %2 = vector.load %arg1[%c0_3, %c0_4] : memref<16x2304xbf16, #tpu.memory_space<vmem>>, vector<16x256xbf16>
    %cst = arith.constant dense<0.000000e+00> : vector<16x64xf32>
    %3 = tpu.matmul %2, %0, %cst {dimension_numbers = #tpu.dot_dimension_numbers<[1], [0], [0], [1], [0, 0, 1, 1], [], []>} : vector<16x256xbf16>, vector<256x64xbf16>, vector<16x64xf32> -> vector<16x64xf32>
    %4 = vector.broadcast %1 : vector<1x64xf32> to vector<16x64xf32>
    %5 = arith.addf %3, %4 : vector<16x64xf32>
    %cst_5 = arith.constant 0.000000e+00 : f32
    %6 = vector.broadcast %cst_5 : f32 to vector<16x64xf32>
    %7 = arith.maximumf %5, %6 : vector<16x64xf32>
    %c0_6 = arith.constant 0 : index
    %c256 = arith.constant 256 : index
    %8 = vector.load %arg1[%c0_6, %c256] : memref<16x2304xbf16, #tpu.memory_space<vmem>>, vector<16x256xbf16>
    %cst_7 = arith.constant dense<0.000000e+00> : vector<16x64xf32>
    %9 = tpu.matmul %8, %0, %cst_7 {dimension_numbers = #tpu.dot_dimension_numbers<[1], [0], [0], [1], [0, 0, 1, 1], [], []>} : vector<16x256xbf16>, vector<256x64xbf16>, vector<16x64xf32> -> vector<16x64xf32>
    %10 = vector.broadcast %1 : vector<1x64xf32> to vector<16x64xf32>
    %11 = arith.addf %9, %10 : vector<16x64xf32>
    %cst_8 = arith.constant 0.000000e+00 : f32
    %12 = vector.broadcast %cst_8 : f32 to vector<16x64xf32>
    %13 = arith.maximumf %11, %12 : vector<16x64xf32>
    %14 = tpu.concatenate %7, %13 in 1 : vector<16x64xf32>, vector<16x64xf32> -> vector<16x128xf32>
    %c0_9 = arith.constant 0 : index
    %c0_10 = arith.constant 0 : index
    %15 = vector.load %arg17[%c0_9, %c0_10] : memref<16x512xf32, #tpu.memory_space<vmem>>, vector<16x128xf32>
    tpu.vector_store %arg17[%c0_9, %c0_10], %14 {strides = array<i32>} : memref<16x512xf32, #tpu.memory_space<vmem>>, vector<16x128xf32>,
    %c0_11 = arith.constant 0 : index
    %c512 = arith.constant 512 : index
    %16 = vector.load %arg1[%c0_11, %c512] : memref<16x2304xbf16, #tpu.memory_space<vmem>>, vector<16x256xbf16>
    %cst_12 = arith.constant dense<0.000000e+00> : vector<16x64xf32>
    %17 = tpu.matmul %16, %0, %cst_12 {dimension_numbers = #tpu.dot_dimension_numbers<[1], [0], [0], [1], [0, 0, 1, 1], [], []>} : vector<16x256xbf16>, vector<256x64xbf16>, vector<16x64xf32> -> vector<16x64xf32>
    %18 = vector.broadcast %1 : vector<1x64xf32> to vector<16x64xf32>
    %19 = arith.addf %17, %18 : vector<16x64xf32>
    %cst_13 = arith.constant 0.000000e+00 : f32
    %20 = vector.broadcast %cst_13 : f32 to vector<16x64xf32>
    %21 = arith.maximumf %19, %20 : vector<16x64xf32>
    %c0_14 = arith.constant 0 : index
    %c768 = arith.constant 768 : index
    %22 = vector.load %arg1[%c0_14, %c768] : memref<16x2304xbf16, #tpu.memory_space<vmem>>, vector<16x256xbf16>
    %cst_15 = arith.constant dense<0.000000e+00> : vector<16x64xf32>
    %23 = tpu.matmul %22, %0, %cst_15 {dimension_numbers = #tpu.dot_dimension_numbers<[1], [0], [0], [1], [0, 0, 1, 1], [], []>} : vector<16x256xbf16>, vector<256x64xbf16>, vector<16x64xf32> -> vector<16x64xf32>
    %24 = vector.broadcast %1 : vector<1x64xf32> to vector<16x64xf32>
    %25 = arith.addf %23, %24 : vector<16x64xf32>
    %cst_16 = arith.constant 0.000000e+00 : f32
    %26 = vector.broadcast %cst_16 : f32 to vector<16x64xf32>
    %27 = arith.maximumf %25, %26 : vector<16x64xf32>
    %28 = tpu.concatenate %21, %27 in 1 : vector<16x64xf32>, vector<16x64xf32> -> vector<16x128xf32>
    %c0_17 = arith.constant 0 : index
    %c128 = arith.constant 128 : index
    %29 = vector.load %arg17[%c0_17, %c128] : memref<16x512xf32, #tpu.memory_space<vmem>>, vector<16x128xf32>
    tpu.vector_store %arg17[%c0_17, %c128], %28 {strides = array<i32>} : memref<16x512xf32, #tpu.memory_space<vmem>>, vector<16x128xf32>,
    %c0_18 = arith.constant 0 : index
    %c1024 = arith.constant 1024 : index
    %30 = vector.load %arg1[%c0_18, %c1024] : memref<16x2304xbf16, #tpu.memory_space<vmem>>, vector<16x256xbf16>
    %cst_19 = arith.constant dense<0.000000e+00> : vector<16x64xf32>
    %31 = tpu.matmul %30, %0, %cst_19 {dimension_numbers = #tpu.dot_dimension_numbers<[1], [0], [0], [1], [0, 0, 1, 1], [], []>} : vector<16x256xbf16>, vector<256x64xbf16>, vector<16x64xf32> -> vector<16x64xf32>
    %32 = vector.broadcast %1 : vector<1x64xf32> to vector<16x64xf32>
    %33 = arith.addf %31, %32 : vector<16x64xf32>
    %cst_20 = arith.constant 0.000000e+00 : f32
    %34 = vector.broadcast %cst_20 : f32 to vector<16x64xf32>
    %35 = arith.maximumf %33, %34 : vector<16x64xf32>
    %c0_21 = arith.constant 0 : index
    %c1280 = arith.constant 1280 : index
    %36 = vector.load %arg1[%c0_21, %c1280] : memref<16x2304xbf16, #tpu.memory_space<vmem>>, vector<16x256xbf16>
    %cst_22 = arith.constant dense<0.000000e+00> : vector<16x64xf32>
    %37 = tpu.matmul %36, %0, %cst_22 {dimension_numbers = #tpu.dot_dimension_numbers<[1], [0], [0], [1], [0, 0, 1, 1], [], []>} : vector<16x256xbf16>, vector<256x64xbf16>, vector<16x64xf32> -> vector<16x64xf32>
    %38 = vector.broadcast %1 : vector<1x64xf32> to vector<16x64xf32>
    %39 = arith.addf %37, %38 : vector<16x64xf32>
    %cst_23 = arith.constant 0.000000e+00 : f32
    %40 = vector.broadcast %cst_23 : f32 to vector<16x64xf32>
    %41 = arith.maximumf %39, %40 : vector<16x64xf32>
    %42 = tpu.concatenate %35, %41 in 1 : vector<16x64xf32>, vector<16x64xf32> -> vector<16x128xf32>
    %c0_24 = arith.constant 0 : index
    %c256_25 = arith.constant 256 : index
    %43 = vector.load %arg17[%c0_24, %c256_25] : memref<16x512xf32, #tpu.memory_space<vmem>>, vector<16x128xf32>
    tpu.vector_store %arg17[%c0_24, %c256_25], %42 {strides = array<i32>} : memref<16x512xf32, #tpu.memory_space<vmem>>, vector<16x128xf32>,
    %c0_26 = arith.constant 0 : index
    %c1536 = arith.constant 1536 : index
    %44 = vector.load %arg1[%c0_26, %c1536] : memref<16x2304xbf16, #tpu.memory_space<vmem>>, vector<16x256xbf16>
    %cst_27 = arith.constant dense<0.000000e+00> : vector<16x64xf32>
    %45 = tpu.matmul %44, %0, %cst_27 {dimension_numbers = #tpu.dot_dimension_numbers<[1], [0], [0], [1], [0, 0, 1, 1], [], []>} : vector<16x256xbf16>, vector<256x64xbf16>, vector<16x64xf32> -> vector<16x64xf32>
    %46 = vector.broadcast %1 : vector<1x64xf32> to vector<16x64xf32>
    %47 = arith.addf %45, %46 : vector<16x64xf32>
    %cst_28 = arith.constant 0.000000e+00 : f32
    %48 = vector.broadcast %cst_28 : f32 to vector<16x64xf32>
    %49 = arith.maximumf %47, %48 : vector<16x64xf32>
    %c0_29 = arith.constant 0 : index
    %c1792 = arith.constant 1792 : index
    %50 = vector.load %arg1[%c0_29, %c1792] : memref<16x2304xbf16, #tpu.memory_space<vmem>>, vector<16x256xbf16>
    %cst_30 = arith.constant dense<0.000000e+00> : vector<16x64xf32>
    %51 = tpu.matmul %50, %0, %cst_30 {dimension_numbers = #tpu.dot_dimension_numbers<[1], [0], [0], [1], [0, 0, 1, 1], [], []>} : vector<16x256xbf16>, vector<256x64xbf16>, vector<16x64xf32> -> vector<16x64xf32>
    %52 = vector.broadcast %1 : vector<1x64xf32> to vector<16x64xf32>
    %53 = arith.addf %51, %52 : vector<16x64xf32>
    %cst_31 = arith.constant 0.000000e+00 : f32
    %54 = vector.broadcast %cst_31 : f32 to vector<16x64xf32>
    %55 = arith.maximumf %53, %54 : vector<16x64xf32>
    %56 = tpu.concatenate %49, %55 in 1 : vector<16x64xf32>, vector<16x64xf32> -> vector<16x128xf32>
    %c0_32 = arith.constant 0 : index
    %c384 = arith.constant 384 : index
    %57 = vector.load %arg17[%c0_32, %c384] : memref<16x512xf32, #tpu.memory_space<vmem>>, vector<16x128xf32>
    tpu.vector_store %arg17[%c0_32, %c384], %56 {strides = array<i32>} : memref<16x512xf32, #tpu.memory_space<vmem>>, vector<16x128xf32>,
    %c0_33 = arith.constant 0 : index
    %c2048 = arith.constant 2048 : index
    %58 = vector.load %arg1[%c0_33, %c2048] : memref<16x2304xbf16, #tpu.memory_space<vmem>>, vector<16x256xbf16>
    %cst_34 = arith.constant dense<0.000000e+00> : vector<16x64xf32>
    %59 = tpu.matmul %58, %0, %cst_34 {dimension_numbers = #tpu.dot_dimension_numbers<[1], [0], [0], [1], [0, 0, 1, 1], [], []>} : vector<16x256xbf16>, vector<256x64xbf16>, vector<16x64xf32> -> vector<16x64xf32>
    %60 = vector.broadcast %1 : vector<1x64xf32> to vector<16x64xf32>
    %61 = arith.addf %59, %60 : vector<16x64xf32>
    %cst_35 = arith.constant 0.000000e+00 : f32
    %62 = vector.broadcast %cst_35 : f32 to vector<16x64xf32>
    %63 = arith.maximumf %61, %62 : vector<16x64xf32>
    %64 = arith.truncf %63 : vector<16x64xf32> to vector<16x64xbf16>
    %c512_36 = arith.constant 512 : index
    %c0_37 = arith.constant 0 : index
    %65 = vector.load %arg6[%c512_36, %c0_37] : memref<576x64xbf16, #tpu.memory_space<vmem>>, vector<64x64xbf16>
    %cst_38 = arith.constant dense<0.000000e+00> : vector<16x64xf32>
    %66 = tpu.matmul %64, %65, %cst_38 {dimension_numbers = #tpu.dot_dimension_numbers<[1], [0], [0], [1], [0, 0, 1, 1], [], []>} : vector<16x64xbf16>, vector<64x64xbf16>, vector<16x64xf32> -> vector<16x64xf32>
    %c0_39 = arith.constant 0 : index
    %c0_40 = arith.constant 0 : index
    %67 = vector.load %arg17[%c0_39, %c0_40] : memref<16x512xf32, #tpu.memory_space<vmem>>, vector<16x256xf32>
    %68 = arith.truncf %67 : vector<16x256xf32> to vector<16x256xbf16>
    %c0_41 = arith.constant 0 : index
    %c0_42 = arith.constant 0 : index
    %69 = vector.load %arg6[%c0_41, %c0_42] : memref<576x64xbf16, #tpu.memory_space<vmem>>, vector<256x64xbf16>
    %cst_43 = arith.constant dense<0.000000e+00> : vector<16x64xf32>
    %70 = tpu.matmul %68, %69, %cst_43 {dimension_numbers = #tpu.dot_dimension_numbers<[1], [0], [0], [1], [0, 0, 1, 1], [], []>} : vector<16x256xbf16>, vector<256x64xbf16>, vector<16x64xf32> -> vector<16x64xf32>
    %71 = arith.addf %66, %70 : vector<16x64xf32>
    %c0_44 = arith.constant 0 : index
    %c256_45 = arith.constant 256 : index
    %72 = vector.load %arg17[%c0_44, %c256_45] : memref<16x512xf32, #tpu.memory_space<vmem>>, vector<16x256xf32>
    %73 = arith.truncf %72 : vector<16x256xf32> to vector<16x256xbf16>
    %c256_46 = arith.constant 256 : index
    %c0_47 = arith.constant 0 : index
    %74 = vector.load %arg6[%c256_46, %c0_47] : memref<576x64xbf16, #tpu.memory_space<vmem>>, vector<256x64xbf16>
    %cst_48 = arith.constant dense<0.000000e+00> : vector<16x64xf32>
    %75 = tpu.matmul %73, %74, %cst_48 {dimension_numbers = #tpu.dot_dimension_numbers<[1], [0], [0], [1], [0, 0, 1, 1], [], []>} : vector<16x256xbf16>, vector<256x64xbf16>, vector<16x64xf32> -> vector<16x64xf32>
    %76 = arith.addf %71, %75 : vector<16x64xf32>
    %c0_49 = arith.constant 0 : index
    %c0_50 = arith.constant 0 : index
    %77 = vector.load %arg7[%c0_49, %c0_50] : memref<1x64xf32, #tpu.memory_space<vmem>>, vector<1x64xf32>
    %78 = vector.broadcast %77 : vector<1x64xf32> to vector<16x64xf32>
    %79 = arith.addf %76, %78 : vector<16x64xf32>
    %cst_51 = arith.constant 0.000000e+00 : f32
    %80 = vector.broadcast %cst_51 : f32 to vector<16x64xf32>
    %81 = arith.maximumf %79, %80 : vector<16x64xf32>
    %c0_52 = arith.constant 0 : index
    %c0_53 = arith.constant 0 : index
    %82 = vector.load %arg2[%c0_52, %c0_53] : memref<16x128xbf16, #tpu.memory_space<vmem>>, vector<16x128xbf16>
    %c0_54 = arith.constant 0 : index
    %c0_55 = arith.constant 0 : index
    %83 = vector.load %arg8[%c0_54, %c0_55] : memref<128x768xbf16, #tpu.memory_space<vmem>>, vector<128x768xbf16>
    %cst_56 = arith.constant dense<0.000000e+00> : vector<16x768xf32>
    %84 = tpu.matmul %82, %83, %cst_56 {dimension_numbers = #tpu.dot_dimension_numbers<[1], [0], [0], [1], [0, 0, 1, 1], [], []>} : vector<16x128xbf16>, vector<128x768xbf16>, vector<16x768xf32> -> vector<16x768xf32>
    %c0_57 = arith.constant 0 : index
    %c0_58 = arith.constant 0 : index
    %85 = vector.load %arg9[%c0_57, %c0_58] : memref<1x768xf32, #tpu.memory_space<vmem>>, vector<1x768xf32>
    %86 = vector.broadcast %85 : vector<1x768xf32> to vector<16x768xf32>
    %87 = arith.addf %84, %86 : vector<16x768xf32>
    %cst_59 = arith.constant 0.000000e+00 : f32
    %88 = vector.broadcast %cst_59 : f32 to vector<16x768xf32>
    %89 = arith.maximumf %87, %88 : vector<16x768xf32>
    %90 = vector.extract_strided_slice %89 {offsets = [0, 0], sizes = [16, 128], strides = [1, 1]} : vector<16x768xf32> to vector<16x128xf32>
    %91 = vector.extract_strided_slice %89 {offsets = [0, 128], sizes = [16, 128], strides = [1, 1]} : vector<16x768xf32> to vector<16x128xf32>
    %92 = arith.maximumf %90, %91 : vector<16x128xf32>
    %93 = vector.extract_strided_slice %89 {offsets = [0, 256], sizes = [16, 128], strides = [1, 1]} : vector<16x768xf32> to vector<16x128xf32>
    %94 = arith.maximumf %92, %93 : vector<16x128xf32>
    %95 = vector.extract_strided_slice %89 {offsets = [0, 384], sizes = [16, 128], strides = [1, 1]} : vector<16x768xf32> to vector<16x128xf32>
    %96 = arith.maximumf %94, %95 : vector<16x128xf32>
    %97 = vector.extract_strided_slice %89 {offsets = [0, 512], sizes = [16, 128], strides = [1, 1]} : vector<16x768xf32> to vector<16x128xf32>
    %98 = arith.maximumf %96, %97 : vector<16x128xf32>
    %99 = vector.extract_strided_slice %89 {offsets = [0, 640], sizes = [16, 128], strides = [1, 1]} : vector<16x768xf32> to vector<16x128xf32>
    %100 = arith.maximumf %98, %99 : vector<16x128xf32>
    %c0_60 = arith.constant 0 : index
    %c0_61 = arith.constant 0 : index
    %101 = vector.load %arg3[%c0_60, %c0_61] : memref<16x384xbf16, #tpu.memory_space<vmem>>, vector<16x384xbf16>
    %c0_62 = arith.constant 0 : index
    %c0_63 = arith.constant 0 : index
    %102 = vector.load %arg12[%c0_62, %c0_63] : memref<384x256xbf16, #tpu.memory_space<vmem>>, vector<384x256xbf16>
    %cst_64 = arith.constant dense<0.000000e+00> : vector<16x256xf32>
    %103 = tpu.matmul %101, %102, %cst_64 {dimension_numbers = #tpu.dot_dimension_numbers<[1], [0], [0], [1], [0, 0, 1, 1], [], []>} : vector<16x384xbf16>, vector<384x256xbf16>, vector<16x256xf32> -> vector<16x256xf32>
    %104 = arith.truncf %81 : vector<16x64xf32> to vector<16x64xbf16>
    %c0_65 = arith.constant 0 : index
    %c0_66 = arith.constant 0 : index
    %105 = vector.load %arg10[%c0_65, %c0_66] : memref<64x256xbf16, #tpu.memory_space<vmem>>, vector<64x256xbf16>
    %cst_67 = arith.constant dense<0.000000e+00> : vector<16x256xf32>
    %106 = tpu.matmul %104, %105, %cst_67 {dimension_numbers = #tpu.dot_dimension_numbers<[1], [0], [0], [1], [0, 0, 1, 1], [], []>} : vector<16x64xbf16>, vector<64x256xbf16>, vector<16x256xf32> -> vector<16x256xf32>
    %107 = arith.addf %103, %106 : vector<16x256xf32>
    %108 = arith.truncf %100 : vector<16x128xf32> to vector<16x128xbf16>
    %c0_68 = arith.constant 0 : index
    %c0_69 = arith.constant 0 : index
    %109 = vector.load %arg11[%c0_68, %c0_69] : memref<128x256xbf16, #tpu.memory_space<vmem>>, vector<128x256xbf16>
    %cst_70 = arith.constant dense<0.000000e+00> : vector<16x256xf32>
    %110 = tpu.matmul %108, %109, %cst_70 {dimension_numbers = #tpu.dot_dimension_numbers<[1], [0], [0], [1], [0, 0, 1, 1], [], []>} : vector<16x128xbf16>, vector<128x256xbf16>, vector<16x256xf32> -> vector<16x256xf32>
    %111 = arith.addf %107, %110 : vector<16x256xf32>
    %c0_71 = arith.constant 0 : index
    %c0_72 = arith.constant 0 : index
    %112 = vector.load %arg13[%c0_71, %c0_72] : memref<1x256xf32, #tpu.memory_space<vmem>>, vector<1x256xf32>
    %113 = vector.broadcast %112 : vector<1x256xf32> to vector<16x256xf32>
    %114 = arith.addf %111, %113 : vector<16x256xf32>
    %cst_73 = arith.constant 0.000000e+00 : f32
    %115 = vector.broadcast %cst_73 : f32 to vector<16x256xf32>
    %116 = arith.maximumf %114, %115 : vector<16x256xf32>
    %117 = arith.truncf %116 : vector<16x256xf32> to vector<16x256xbf16>
    %c0_74 = arith.constant 0 : index
    %c0_75 = arith.constant 0 : index
    %118 = vector.load %arg14[%c0_74, %c0_75] : memref<256x128xbf16, #tpu.memory_space<vmem>>, vector<256x128xbf16>
    %cst_76 = arith.constant dense<0.000000e+00> : vector<16x128xf32>
    %119 = tpu.matmul %117, %118, %cst_76 {dimension_numbers = #tpu.dot_dimension_numbers<[1], [0], [0], [1], [0, 0, 1, 1], [], []>} : vector<16x256xbf16>, vector<256x128xbf16>, vector<16x128xf32> -> vector<16x128xf32>
    %c0_77 = arith.constant 0 : index
    %c0_78 = arith.constant 0 : index
    %120 = vector.load %arg15[%c0_77, %c0_78] : memref<1x128xf32, #tpu.memory_space<vmem>>, vector<1x128xf32>
    %121 = vector.broadcast %120 : vector<1x128xf32> to vector<16x128xf32>
    %122 = arith.addf %119, %121 : vector<16x128xf32>
    %c0_79 = arith.constant 0 : index
    %c0_80 = arith.constant 0 : index
    %123 = vector.load %arg16[%c0_79, %c0_80] : memref<16x128xf32, #tpu.memory_space<vmem>>, vector<16x128xf32>
    tpu.vector_store %arg16[%c0_79, %c0_80], %122 {strides = array<i32>} : memref<16x128xf32, #tpu.memory_space<vmem>>, vector<16x128xf32>,
    return
  }
  func.func @transform_0(%arg0: i32) -> (i32, i32) {
    %c0_i32 = arith.constant 0 : i32
    %c0_i32_0 = arith.constant 0 : i32
    return %arg0, %c0_i32 : i32, i32
  }
  func.func @transform_1(%arg0: i32) -> (i32, i32) {
    %c0_i32 = arith.constant 0 : i32
    %c0_i32_0 = arith.constant 0 : i32
    return %arg0, %c0_i32 : i32, i32
  }
  func.func @transform_2(%arg0: i32) -> (i32, i32) {
    %c0_i32 = arith.constant 0 : i32
    %c0_i32_0 = arith.constant 0 : i32
    return %arg0, %c0_i32 : i32, i32
  }
  func.func @transform_3(%arg0: i32) -> (i32, i32) {
    %c0_i32 = arith.constant 0 : i32
    %c0_i32_0 = arith.constant 0 : i32
    %c0_i32_1 = arith.constant 0 : i32
    return %c0_i32, %c0_i32_0 : i32, i32
  }
  func.func @transform_4(%arg0: i32) -> (i32, i32) {
    %c0_i32 = arith.constant 0 : i32
    %c0_i32_0 = arith.constant 0 : i32
    %c0_i32_1 = arith.constant 0 : i32
    return %c0_i32, %c0_i32_0 : i32, i32
  }
  func.func @transform_5(%arg0: i32) -> (i32, i32) {
    %c0_i32 = arith.constant 0 : i32
    %c0_i32_0 = arith.constant 0 : i32
    %c0_i32_1 = arith.constant 0 : i32
    return %c0_i32, %c0_i32_0 : i32, i32
  }
  func.func @transform_6(%arg0: i32) -> (i32, i32) {
    %c0_i32 = arith.constant 0 : i32
    %c0_i32_0 = arith.constant 0 : i32
    %c0_i32_1 = arith.constant 0 : i32
    return %c0_i32, %c0_i32_0 : i32, i32
  }
  func.func @transform_7(%arg0: i32) -> (i32, i32) {
    %c0_i32 = arith.constant 0 : i32
    %c0_i32_0 = arith.constant 0 : i32
    %c0_i32_1 = arith.constant 0 : i32
    return %c0_i32, %c0_i32_0 : i32, i32
  }
  func.func @transform_8(%arg0: i32) -> (i32, i32) {
    %c0_i32 = arith.constant 0 : i32
    %c0_i32_0 = arith.constant 0 : i32
    %c0_i32_1 = arith.constant 0 : i32
    return %c0_i32, %c0_i32_0 : i32, i32
  }
  func.func @transform_9(%arg0: i32) -> (i32, i32) {
    %c0_i32 = arith.constant 0 : i32
    %c0_i32_0 = arith.constant 0 : i32
    %c0_i32_1 = arith.constant 0 : i32
    return %c0_i32, %c0_i32_0 : i32, i32
  }
  func.func @transform_10(%arg0: i32) -> (i32, i32) {
    %c0_i32 = arith.constant 0 : i32
    %c0_i32_0 = arith.constant 0 : i32
    %c0_i32_1 = arith.constant 0 : i32
    return %c0_i32, %c0_i32_0 : i32, i32
  }
  func.func @transform_11(%arg0: i32) -> (i32, i32) {
    %c0_i32 = arith.constant 0 : i32
    %c0_i32_0 = arith.constant 0 : i32
    %c0_i32_1 = arith.constant 0 : i32
    return %c0_i32, %c0_i32_0 : i32, i32
  }
  func.func @transform_12(%arg0: i32) -> (i32, i32) {
    %c0_i32 = arith.constant 0 : i32
    %c0_i32_0 = arith.constant 0 : i32
    %c0_i32_1 = arith.constant 0 : i32
    return %c0_i32, %c0_i32_0 : i32, i32
  }
  func.func @transform_13(%arg0: i32) -> (i32, i32) {
    %c0_i32 = arith.constant 0 : i32
    %c0_i32_0 = arith.constant 0 : i32
    %c0_i32_1 = arith.constant 0 : i32
    return %c0_i32, %c0_i32_0 : i32, i32
  }
  func.func @transform_14(%arg0: i32) -> (i32, i32) {
    %c0_i32 = arith.constant 0 : i32
    %c0_i32_0 = arith.constant 0 : i32
    %c0_i32_1 = arith.constant 0 : i32
    return %c0_i32, %c0_i32_0 : i32, i32
  }
  func.func @transform_15(%arg0: i32) -> (i32, i32) {
    %c0_i32 = arith.constant 0 : i32
    %c0_i32_0 = arith.constant 0 : i32
    return %arg0, %c0_i32 : i32, i32
  }
}

</mosaic_0001>

<llo_original>
// kernel: policy_forward.1
$region0: #{policy_forward.1}
  #allocation0 [shape = 'u32[]', space=smem, size = 0x4, offset = 0x4, fixed_abs, tag = 'smem constant byte address 0x4 - core index']
  #allocation1 [shape = 'u32[144,128]{1,0:T(1,128)}', space=vmem, size = 0x12000, scoped, tag = 'internal scratch']
  #allocation2 [shape = 'f32[16,512]{1,0:T(8,128)}', space=vmem, size = 0x8000, scoped, tag = 'scratch operand']
  %s0 = inlined_call_operand.vmem [shape: bf16[16,2304], index: 0, kind: input, shape index: {}]
  %s1 = inlined_call_operand.vmem [shape: bf16[16,128], index: 1, kind: input, shape index: {}]
  %s2 = inlined_call_operand.vmem [shape: bf16[16,384], index: 2, kind: input, shape index: {}]
  %s3 = inlined_call_operand.vmem [shape: bf16[256,64], index: 3, kind: input, shape index: {}]
  %s4 = inlined_call_operand.vmem [shape: f32[1,64], index: 4, kind: input, shape index: {}]
  %s5 = inlined_call_operand.vmem [shape: bf16[576,64], index: 5, kind: input, shape index: {}]
  %s6 = inlined_call_operand.vmem [shape: f32[1,64], index: 6, kind: input, shape index: {}]
  %s7 = inlined_call_operand.vmem [shape: bf16[128,768], index: 7, kind: input, shape index: {}]
  %s8 = inlined_call_operand.vmem [shape: f32[1,768], index: 8, kind: input, shape index: {}]
  %s9 = inlined_call_operand.vmem [shape: bf16[64,256], index: 9, kind: input, shape index: {}]
  %s10 = inlined_call_operand.vmem [shape: bf16[128,256], index: 10, kind: input, shape index: {}]
  %s11 = inlined_call_operand.vmem [shape: bf16[384,256], index: 11, kind: input, shape index: {}]
  %s12 = inlined_call_operand.vmem [shape: f32[1,256], index: 12, kind: input, shape index: {}]
  %s13 = inlined_call_operand.vmem [shape: bf16[256,128], index: 13, kind: input, shape index: {}]
  %s14 = inlined_call_operand.vmem [shape: f32[1,128], index: 14, kind: input, shape index: {}]
  %s15 = inlined_call_operand.vmem [shape: f32[16,128], index: 15, kind: output, shape index: {}]
  %s16 = sld [smem:[#allocation0]]
  $region70: #{policy_forward.1} parent=0
    _
  %s18 = ssub.s32 1, %s16
  %s19 = scalar_select 0, %s18, %s16
  // Predicated region
  $region2: #{policy_forward.1} parent=0 // pred_check
    _
  $region3: #{policy_forward.1} parent=0 // pred_check_branch
    %21 = sbr.rel (0) target = $region5
  $region4: #{policy_forward.1} parent=0 // pred_region
    _
  $region5: #{policy_forward.1} parent=0 // pred_fallthru
    _
  // Predicated region
  $region6: #{policy_forward.1} parent=0 // pred_check
    _
  $region7: #{policy_forward.1} parent=0 // pred_check_branch
    %23 = sbr.rel (0) target = $region9
  $region8: #{policy_forward.1} parent=0 // pred_region
    _
  $region9: #{policy_forward.1} parent=0 // pred_fallthru
    _
  // Predicated region
  $region10: #{policy_forward.1} parent=0 // pred_check
    _
  $region11: #{policy_forward.1} parent=0 // pred_check_branch
    %25 = sbr.rel (0) target = $region13
  $region12: #{policy_forward.1} parent=0 // pred_region
    _
  $region13: #{policy_forward.1} parent=0 // pred_fallthru
    _
  // Predicated region
  $region14: #{policy_forward.1} parent=0 // pred_check
    _
  $region15: #{policy_forward.1} parent=0 // pred_check_branch
    %27 = sbr.rel (0) target = $region17
  $region16: #{policy_forward.1} parent=0 // pred_region
    _
  $region17: #{policy_forward.1} parent=0 // pred_fallthru
    _
  // Predicated region
  $region18: #{policy_forward.1} parent=0 // pred_check
    _
  $region19: #{policy_forward.1} parent=0 // pred_check_branch
    %29 = sbr.rel (0) target = $region21
  $region20: #{policy_forward.1} parent=0 // pred_region
    _
  $region21: #{policy_forward.1} parent=0 // pred_fallthru
    _
  // Predicated region
  $region22: #{policy_forward.1} parent=0 // pred_check
    _
  $region23: #{policy_forward.1} parent=0 // pred_check_branch
    %31 = sbr.rel (0) target = $region25
  $region24: #{policy_forward.1} parent=0 // pred_region
    _
  $region25: #{policy_forward.1} parent=0 // pred_fallthru
    _
  // Predicated region
  $region26: #{policy_forward.1} parent=0 // pred_check
    _
  $region27: #{policy_forward.1} parent=0 // pred_check_branch
    %33 = sbr.rel (0) target = $region29
  $region28: #{policy_forward.1} parent=0 // pred_region
    _
  $region29: #{policy_forward.1} parent=0 // pred_fallthru
    _
  // Predicated region
  $region30: #{policy_forward.1} parent=0 // pred_check
    _
  $region31: #{policy_forward.1} parent=0 // pred_check_branch
    %35 = sbr.rel (0) target = $region33
  $region32: #{policy_forward.1} parent=0 // pred_region
    _
  $region33: #{policy_forward.1} parent=0 // pred_fallthru
    _
  // Predicated region
  $region34: #{policy_forward.1} parent=0 // pred_check
    _
  $region35: #{policy_forward.1} parent=0 // pred_check_branch
    %37 = sbr.rel (0) target = $region37
  $region36: #{policy_forward.1} parent=0 // pred_region
    _
  $region37: #{policy_forward.1} parent=0 // pred_fallthru
    _
  // Predicated region
  $region38: #{policy_forward.1} parent=0 // pred_check
    _
  $region39: #{policy_forward.1} parent=0 // pred_check_branch
    %39 = sbr.rel (0) target = $region41
  $region40: #{policy_forward.1} parent=0 // pred_region
    _
  $region41: #{policy_forward.1} parent=0 // pred_fallthru
    _
  // Predicated region
  $region42: #{policy_forward.1} parent=0 // pred_check
    _
  $region43: #{policy_forward.1} parent=0 // pred_check_branch
    %41 = sbr.rel (0) target = $region45
  $region44: #{policy_forward.1} parent=0 // pred_region
    _
  $region45: #{policy_forward.1} parent=0 // pred_fallthru
    _
  // Predicated region
  $region46: #{policy_forward.1} parent=0 // pred_check
    _
  $region47: #{policy_forward.1} parent=0 // pred_check_branch
    %43 = sbr.rel (0) target = $region49
  $region48: #{policy_forward.1} parent=0 // pred_region
    _
  $region49: #{policy_forward.1} parent=0 // pred_fallthru
    _
  // Predicated region
  $region50: #{policy_forward.1} parent=0 // pred_check
    _
  $region51: #{policy_forward.1} parent=0 // pred_check_branch
    %45 = sbr.rel (0) target = $region53
  $region52: #{policy_forward.1} parent=0 // pred_region
    _
  $region53: #{policy_forward.1} parent=0 // pred_fallthru
    _
  // Predicated region
  $region54: #{policy_forward.1} parent=0 // pred_check
    _
  $region55: #{policy_forward.1} parent=0 // pred_check_branch
    %47 = sbr.rel (0) target = $region57
  $region56: #{policy_forward.1} parent=0 // pred_region
    _
  $region57: #{policy_forward.1} parent=0 // pred_fallthru
    _
  // Predicated region
  $region58: #{policy_forward.1} parent=0 // pred_check
    _
  $region59: #{policy_forward.1} parent=0 // pred_check_branch
    %49 = sbr.rel (0) target = $region61
  $region60: #{policy_forward.1} parent=0 // pred_region
    _
  $region61: #{policy_forward.1} parent=0 // pred_fallthru
    _
  %v51 = vld [vmem:[%s3] sm:$0xf]
  %v52 = vld [vmem:[%s3 + $0x4] sm:$0xf]
  %v53 = vld [vmem:[%s3 + $0x8] sm:$0xf]
  %v54 = vld [vmem:[%s3 + $0xc] sm:$0xf]
  %v55 = vld [vmem:[%s3 + $0x10] sm:$0xf]
  %v56 = vld [vmem:[%s3 + $0x14] sm:$0xf]
  %v57 = vld [vmem:[%s3 + $0x18] sm:$0xf]
  %v58 = vld [vmem:[%s3 + $0x1c] sm:$0xf]
  %v59 = vld [vmem:[%s3 + $0x20] sm:$0xf]
  %v60 = vld [vmem:[%s3 + $0x24] sm:$0xf]
  %v61 = vld [vmem:[%s3 + $0x28] sm:$0xf]
  %v62 = vld [vmem:[%s3 + $0x2c] sm:$0xf]
  %v63 = vld [vmem:[%s3 + $0x30] sm:$0xf]
  %v64 = vld [vmem:[%s3 + $0x34] sm:$0xf]
  %v65 = vld [vmem:[%s3 + $0x38] sm:$0xf]
  %v66 = vld [vmem:[%s3 + $0x3c] sm:$0xf]
  %v67 = vld [vmem:[%s3 + $0x40] sm:$0xf]
  %v68 = vld [vmem:[%s3 + $0x44] sm:$0xf]
  %v69 = vld [vmem:[%s3 + $0x48] sm:$0xf]
  %v70 = vld [vmem:[%s3 + $0x4c] sm:$0xf]
  %v71 = vld [vmem:[%s3 + $0x50] sm:$0xf]
  %v72 = vld [vmem:[%s3 + $0x54] sm:$0xf]
  %v73 = vld [vmem:[%s3 + $0x58] sm:$0xf]
  %v74 = vld [vmem:[%s3 + $0x5c] sm:$0xf]
  %v75 = vld [vmem:[%s3 + $0x60] sm:$0xf]
  %v76 = vld [vmem:[%s3 + $0x64] sm:$0xf]
  %v77 = vld [vmem:[%s3 + $0x68] sm:$0xf]
  %v78 = vld [vmem:[%s3 + $0x6c] sm:$0xf]
  %v79 = vld [vmem:[%s3 + $0x70] sm:$0xf]
  %v80 = vld [vmem:[%s3 + $0x74] sm:$0xf]
  %v81 = vld [vmem:[%s3 + $0x78] sm:$0xf]
  %v82 = vld [vmem:[%s3 + $0x7c] sm:$0xf]
  %v83 = vld [vmem:[%s4] sm:$0x1]
  %v84 = vld [vmem:[%s0] sm:$0xff]
  %v85 = vld [vmem:[%s0 + $0x48] sm:$0xff]
  %v87 = vlaneseq
  %v88 = vshrl.u32 %v87, 7
  %v89 = vsub.s32 0, %v88
  %v90 = vrot.slane %v83, %v89
  %v94 = vunpack.c.l.b16 %v84
  %v95 = vunpack.c.h.b16 %v84
  %v96 = vunpack.c.l.b16 %v85
  %v97 = vunpack.c.h.b16 %v85
  %v98 = vpack.c.b16 %v96, %v94
  %v99 = vpack.c.b16 %v97, %v95
  %v134 = vunpack.c.l.b16 %v51
  %v135 = vunpack.c.l.b16 %v52
  %v136 = vunpack.c.l.b16 %v53
  %v137 = vunpack.c.l.b16 %v54
  %v138 = vunpack.c.l.b16 %v55
  %v139 = vunpack.c.l.b16 %v56
  %v140 = vunpack.c.l.b16 %v57
  %v141 = vunpack.c.l.b16 %v58
  %v142 = vunpack.c.l.b16 %v59
  %v143 = vunpack.c.l.b16 %v60
  %v144 = vunpack.c.l.b16 %v61
  %v145 = vunpack.c.l.b16 %v62
  %v146 = vunpack.c.l.b16 %v63
  %v147 = vunpack.c.l.b16 %v64
  %v148 = vunpack.c.l.b16 %v65
  %v149 = vunpack.c.l.b16 %v66
  %v150 = vunpack.c.l.b16 %v67
  %v151 = vunpack.c.l.b16 %v68
  %v152 = vunpack.c.l.b16 %v69
  %v153 = vunpack.c.l.b16 %v70
  %v154 = vunpack.c.l.b16 %v71
  %v155 = vunpack.c.l.b16 %v72
  %v156 = vunpack.c.l.b16 %v73
  %v157 = vunpack.c.l.b16 %v74
  %v158 = vunpack.c.l.b16 %v75
  %v159 = vunpack.c.l.b16 %v76
  %v160 = vunpack.c.l.b16 %v77
  %v161 = vunpack.c.l.b16 %v78
  %v162 = vunpack.c.l.b16 %v79
  %v163 = vunpack.c.l.b16 %v80
  %v164 = vunpack.c.l.b16 %v81
  %v165 = vunpack.c.l.b16 %v82
  %v166 = vpack.c.b16 %v135, %v134
  %v167 = vpack.c.b16 %v137, %v136
  %v168 = vpack.c.b16 %v139, %v138
  %v169 = vpack.c.b16 %v141, %v140
  %v170 = vpack.c.b16 %v143, %v142
  %v171 = vpack.c.b16 %v145, %v144
  %v172 = vpack.c.b16 %v147, %v146
  %v173 = vpack.c.b16 %v149, %v148
  %v174 = vpack.c.b16 %v151, %v150
  %v175 = vpack.c.b16 %v153, %v152
  %v176 = vpack.c.b16 %v155, %v154
  %v177 = vpack.c.b16 %v157, %v156
  %v178 = vpack.c.b16 %v159, %v158
  %v179 = vpack.c.b16 %v161, %v160
  %v180 = vpack.c.b16 %v163, %v162
  %v181 = vpack.c.b16 %v165, %v164
  %198 = vmatprep.subr.bf16.mxu0 0
  %199 = vmatpush1.bf16.msra.mxu0 %v166
  %200 = vmatprep.subr.bf16.mxu0 0
  %201 = vmatpush1.bf16.msra.mxu0 %v167
  %202 = vmatprep.subr.bf16.mxu0 0
  %203 = vmatpush1.bf16.msra.mxu0 %v168
  %204 = vmatprep.subr.bf16.mxu0 0
  %205 = vmatpush1.bf16.msra.mxu0 %v169
  %206 = vmatprep.subr.bf16.mxu0 0
  %207 = vmatpush1.bf16.msra.mxu0 %v170
  %208 = vmatprep.subr.bf16.mxu0 0
  %209 = vmatpush1.bf16.msra.mxu0 %v171
  %210 = vmatprep.subr.bf16.mxu0 0
  %211 = vmatpush1.bf16.msra.mxu0 %v172
  %212 = vmatprep.subr.bf16.mxu0 0
  %213 = vmatpush1.bf16.msra.mxu0 %v173
  %214 = vmatprep.subr.bf16.mxu0 0
  %215 = vmatpush1.bf16.msra.mxu0 %v174
  %216 = vmatprep.subr.bf16.mxu0 0
  %217 = vmatpush1.bf16.msra.mxu0 %v175
  %218 = vmatprep.subr.bf16.mxu0 0
  %219 = vmatpush1.bf16.msra.mxu0 %v176
  %220 = vmatprep.subr.bf16.mxu0 0
  %221 = vmatpush1.bf16.msra.mxu0 %v177
  %222 = vmatprep.subr.bf16.mxu0 0
  %223 = vmatpush1.bf16.msra.mxu0 %v178
  %224 = vmatprep.subr.bf16.mxu0 0
  %225 = vmatpush1.bf16.msra.mxu0 %v179
  %226 = vmatprep.subr.bf16.mxu0 0
  %227 = vmatpush1.bf16.msra.mxu0 %v180
  %228 = vmatprep.subr.bf16.mxu0 0
  %229 = vmatpush1.bf16.msra.mxu0 %v181
  %230 = vmatprep.mubr.bf16.mxu0 %v99
  %231 = vmatmul.mubr.bf16.gmra.mrb[0].mxu0 %v98
  %v232 = vpop.f32.mrb[0].mxu0
  %v233 = vadd.f32 %v90, %v232
  %v234 = vpop.f32.mrb[0].mxu0
  %v235 = vpop.f32.mrb[0].mxu0
  %v236 = vadd.f32 %v90, %v235
  %v237 = vpop.f32.mrb[0].mxu0
  %238 = vdwg.mxu0
  %v239 = vmax.f32 %v233, 0.0
  %v240 = vmax.f32 %v236, 0.0
  %v241 = vld [vmem:[%s0 + $0x8] sm:$0xff]
  %v242 = vld [vmem:[%s0 + $0x50] sm:$0xff]
  %v245 = vunpack.c.l.b16 %v241
  %v246 = vunpack.c.h.b16 %v241
  %v247 = vunpack.c.l.b16 %v242
  %v248 = vunpack.c.h.b16 %v242
  %v249 = vpack.c.b16 %v247, %v245
  %v250 = vpack.c.b16 %v248, %v246
  %253 = vmatprep.subr.bf16.mxu0 0
  %254 = vmatpush1.bf16.msra.mxu0 %v166
  %255 = vmatprep.subr.bf16.mxu0 0
  %256 = vmatpush1.bf16.msra.mxu0 %v167
  %257 = vmatprep.subr.bf16.mxu0 0
  %258 = vmatpush1.bf16.msra.mxu0 %v168
  %259 = vmatprep.subr.bf16.mxu0 0
  %260 = vmatpush1.bf16.msra.mxu0 %v169
  %261 = vmatprep.subr.bf16.mxu0 0
  %262 = vmatpush1.bf16.msra.mxu0 %v170
  %263 = vmatprep.subr.bf16.mxu0 0
  %264 = vmatpush1.bf16.msra.mxu0 %v171
  %265 = vmatprep.subr.bf16.mxu0 0
  %266 = vmatpush1.bf16.msra.mxu0 %v172
  %267 = vmatprep.subr.bf16.mxu0 0
  %268 = vmatpush1.bf16.msra.mxu0 %v173
  %269 = vmatprep.subr.bf16.mxu0 0
  %270 = vmatpush1.bf16.msra.mxu0 %v174
  %271 = vmatprep.subr.bf16.mxu0 0
  %272 = vmatpush1.bf16.msra.mxu0 %v175
  %273 = vmatprep.subr.bf16.mxu0 0
  %274 = vmatpush1.bf16.msra.mxu0 %v176
  %275 = vmatprep.subr.bf16.mxu0 0
  %276 = vmatpush1.bf16.msra.mxu0 %v177
  %277 = vmatprep.subr.bf16.mxu0 0
  %278 = vmatpush1.bf16.msra.mxu0 %v178
  %279 = vmatprep.subr.bf16.mxu0 0
  %280 = vmatpush1.bf16.msra.mxu0 %v179
  %281 = vmatprep.subr.bf16.mxu0 0
  %282 = vmatpush1.bf16.msra.mxu0 %v180
  %283 = vmatprep.subr.bf16.mxu0 0
  %284 = vmatpush1.bf16.msra.mxu0 %v181
  %285 = vmatprep.mubr.bf16.mxu0 %v250
  %286 = vmatmul.mubr.bf16.gmra.mrb[0].mxu0 %v249
  %v287 = vpop.f32.mrb[0].mxu0
  %v288 = vadd.f32 %v90, %v287
  %v289 = vpop.f32.mrb[0].mxu0
  %v290 = vpop.f32.mrb[0].mxu0
  %v291 = vadd.f32 %v90, %v290
  %v292 = vpop.f32.mrb[0].mxu0
  %293 = vdwg.mxu0
  %v294 = vmax.f32 %v288, 0.0
  %v295 = vmax.f32 %v291, 0.0
  %298 = vrot.lane.b32.xlu0 %v294, 64
  %v299 = vpop.permute.xlu0 %298
  %300 = vrot.lane.b32.xlu0 %v295, 64
  %v301 = vpop.permute.xlu0 %300
  %vm304 = vcmask 523264
  %v305 = vsel %vm304, %v239, %v299
  %v306 = vsel %vm304, %v240, %v301
  %307 = vst [vmem:[#allocation2] sm:$0xff] %v305
  %308 = vst [vmem:[#allocation2 + $0x20] sm:$0xff] %v306
  %v309 = vld [vmem:[%s0 + $0x10] sm:$0xff]
  %v310 = vld [vmem:[%s0 + $0x58] sm:$0xff]
  %v313 = vunpack.c.l.b16 %v309
  %v314 = vunpack.c.h.b16 %v309
  %v315 = vunpack.c.l.b16 %v310
  %v316 = vunpack.c.h.b16 %v310
  %v317 = vpack.c.b16 %v315, %v313
  %v318 = vpack.c.b16 %v316, %v314
  %321 = vmatprep.subr.bf16.mxu0 0
  %322 = vmatpush1.bf16.msra.mxu0 %v166
  %323 = vmatprep.subr.bf16.mxu0 0
  %324 = vmatpush1.bf16.msra.mxu0 %v167
  %325 = vmatprep.subr.bf16.mxu0 0
  %326 = vmatpush1.bf16.msra.mxu0 %v168
  %327 = vmatprep.subr.bf16.mxu0 0
  %328 = vmatpush1.bf16.msra.mxu0 %v169
  %329 = vmatprep.subr.bf16.mxu0 0
  %330 = vmatpush1.bf16.msra.mxu0 %v170
  %331 = vmatprep.subr.bf16.mxu0 0
  %332 = vmatpush1.bf16.msra.mxu0 %v171
  %333 = vmatprep.subr.bf16.mxu0 0
  %334 = vmatpush1.bf16.msra.mxu0 %v172
  %335 = vmatprep.subr.bf16.mxu0 0
  %336 = vmatpush1.bf16.msra.mxu0 %v173
  %337 = vmatprep.subr.bf16.mxu0 0
  %338 = vmatpush1.bf16.msra.mxu0 %v174
  %339 = vmatprep.subr.bf16.mxu0 0
  %340 = vmatpush1.bf16.msra.mxu0 %v175
  %341 = vmatprep.subr.bf16.mxu0 0
  %342 = vmatpush1.bf16.msra.mxu0 %v176
  %343 = vmatprep.subr.bf16.mxu0 0
  %344 = vmatpush1.bf16.msra.mxu0 %v177
  %345 = vmatprep.subr.bf16.mxu0 0
  %346 = vmatpush1.bf16.msra.mxu0 %v178
  %347 = vmatprep.subr.bf16.mxu0 0
  %348 = vmatpush1.bf16.msra.mxu0 %v179
  %349 = vmatprep.subr.bf16.mxu0 0
  %350 = vmatpush1.bf16.msra.mxu0 %v180
  %351 = vmatprep.subr.bf16.mxu0 0
  %352 = vmatpush1.bf16.msra.mxu0 %v181
  %353 = vmatprep.mubr.bf16.mxu0 %v318
  %354 = vmatmul.mubr.bf16.gmra.mrb[0].mxu0 %v317
  %v355 = vpop.f32.mrb[0].mxu0
  %v356 = vadd.f32 %v90, %v355
  %v357 = vpop.f32.mrb[0].mxu0
  %v358 = vpop.f32.mrb[0].mxu0
  %v359 = vadd.f32 %v90, %v358
  %v360 = vpop.f32.mrb[0].mxu0
  %361 = vdwg.mxu0
  %v362 = vmax.f32 %v356, 0.0
  %v363 = vmax.f32 %v359, 0.0
  %v364 = vld [vmem:[%s0 + $0x18] sm:$0xff]
  %v365 = vld [vmem:[%s0 + $0x60] sm:$0xff]
  %v368 = vunpack.c.l.b16 %v364
  %v369 = vunpack.c.h.b16 %v364
  %v370 = vunpack.c.l.b16 %v365
  %v371 = vunpack.c.h.b16 %v365
  %v372 = vpack.c.b16 %v370, %v368
  %v373 = vpack.c.b16 %v371, %v369
  %376 = vmatprep.subr.bf16.mxu0 0
  %377 = vmatpush1.bf16.msra.mxu0 %v166
  %378 = vmatprep.subr.bf16.mxu0 0
  %379 = vmatpush1.bf16.msra.mxu0 %v167
  %380 = vmatprep.subr.bf16.mxu0 0
  %381 = vmatpush1.bf16.msra.mxu0 %v168
  %382 = vmatprep.subr.bf16.mxu0 0
  %383 = vmatpush1.bf16.msra.mxu0 %v169
  %384 = vmatprep.subr.bf16.mxu0 0
  %385 = vmatpush1.bf16.msra.mxu0 %v170
  %386 = vmatprep.subr.bf16.mxu0 0
  %387 = vmatpush1.bf16.msra.mxu0 %v171
  %388 = vmatprep.subr.bf16.mxu0 0
  %389 = vmatpush1.bf16.msra.mxu0 %v172
  %390 = vmatprep.subr.bf16.mxu0 0
  %391 = vmatpush1.bf16.msra.mxu0 %v173
  %392 = vmatprep.subr.bf16.mxu0 0
  %393 = vmatpush1.bf16.msra.mxu0 %v174
  %394 = vmatprep.subr.bf16.mxu0 0
  %395 = vmatpush1.bf16.msra.mxu0 %v175
  %396 = vmatprep.subr.bf16.mxu0 0
  %397 = vmatpush1.bf16.msra.mxu0 %v176
  %398 = vmatprep.subr.bf16.mxu0 0
  %399 = vmatpush1.bf16.msra.mxu0 %v177
  %400 = vmatprep.subr.bf16.mxu0 0
  %401 = vmatpush1.bf16.msra.mxu0 %v178
  %402 = vmatprep.subr.bf16.mxu0 0
  %403 = vmatpush1.bf16.msra.mxu0 %v179
  %404 = vmatprep.subr.bf16.mxu0 0
  %405 = vmatpush1.bf16.msra.mxu0 %v180
  %406 = vmatprep.subr.bf16.mxu0 0
  %407 = vmatpush1.bf16.msra.mxu0 %v181
  %408 = vmatprep.mubr.bf16.mxu0 %v373
  %409 = vmatmul.mubr.bf16.gmra.mrb[0].mxu0 %v372
  %v410 = vpop.f32.mrb[0].mxu0
  %v411 = vadd.f32 %v90, %v410
  %v412 = vpop.f32.mrb[0].mxu0
  %v413 = vpop.f32.mrb[0].mxu0
  %v414 = vadd.f32 %v90, %v413
  %v415 = vpop.f32.mrb[0].mxu0
  %416 = vdwg.mxu0
  %v417 = vmax.f32 %v411, 0.0
  %v418 = vmax.f32 %v414, 0.0
  %421 = vrot.lane.b32.xlu0 %v417, 64
  %v422 = vpop.permute.xlu0 %421
  %423 = vrot.lane.b32.xlu0 %v418, 64
  %v424 = vpop.permute.xlu0 %423
  %v427 = vsel %vm304, %v362, %v422
  %v428 = vsel %vm304, %v363, %v424
  %429 = vst [vmem:[#allocation2 + $0x8] sm:$0xff] %v427
  %430 = vst [vmem:[#allocation2 + $0x28] sm:$0xff] %v428
  %v431 = vld [vmem:[%s0 + $0x20] sm:$0xff]
  %v432 = vld [vmem:[%s0 + $0x68] sm:$0xff]
  %v435 = vunpack.c.l.b16 %v431
  %v436 = vunpack.c.h.b16 %v431
  %v437 = vunpack.c.l.b16 %v432
  %v438 = vunpack.c.h.b16 %v432
  %v439 = vpack.c.b16 %v437, %v435
  %v440 = vpack.c.b16 %v438, %v436
  %443 = vmatprep.subr.bf16.mxu0 0
  %444 = vmatpush1.bf16.msra.mxu0 %v166
  %445 = vmatprep.subr.bf16.mxu0 0
  %446 = vmatpush1.bf16.msra.mxu0 %v167
  %447 = vmatprep.subr.bf16.mxu0 0
  %448 = vmatpush1.bf16.msra.mxu0 %v168
  %449 = vmatprep.subr.bf16.mxu0 0
  %450 = vmatpush1.bf16.msra.mxu0 %v169
  %451 = vmatprep.subr.bf16.mxu0 0
  %452 = vmatpush1.bf16.msra.mxu0 %v170
  %453 = vmatprep.subr.bf16.mxu0 0
  %454 = vmatpush1.bf16.msra.mxu0 %v171
  %455 = vmatprep.subr.bf16.mxu0 0
  %456 = vmatpush1.bf16.msra.mxu0 %v172
  %457 = vmatprep.subr.bf16.mxu0 0
  %458 = vmatpush1.bf16.msra.mxu0 %v173
  %459 = vmatprep.subr.bf16.mxu0 0
  %460 = vmatpush1.bf16.msra.mxu0 %v174
  %461 = vmatprep.subr.bf16.mxu0 0
  %462 = vmatpush1.bf16.msra.mxu0 %v175
  %463 = vmatprep.subr.bf16.mxu0 0
  %464 = vmatpush1.bf16.msra.mxu0 %v176
  %465 = vmatprep.subr.bf16.mxu0 0
  %466 = vmatpush1.bf16.msra.mxu0 %v177
  %467 = vmatprep.subr.bf16.mxu0 0
  %468 = vmatpush1.bf16.msra.mxu0 %v178
  %469 = vmatprep.subr.bf16.mxu0 0
  %470 = vmatpush1.bf16.msra.mxu0 %v179
  %471 = vmatprep.subr.bf16.mxu0 0
  %472 = vmatpush1.bf16.msra.mxu0 %v180
  %473 = vmatprep.subr.bf16.mxu0 0
  %474 = vmatpush1.bf16.msra.mxu0 %v181
  %475 = vmatprep.mubr.bf16.mxu0 %v440
  %476 = vmatmul.mubr.bf16.gmra.mrb[0].mxu0 %v439
  %v477 = vpop.f32.mrb[0].mxu0
  %v478 = vadd.f32 %v90, %v477
  %v479 = vpop.f32.mrb[0].mxu0
  %v480 = vpop.f32.mrb[0].mxu0
  %v481 = vadd.f32 %v90, %v480
  %v482 = vpop.f32.mrb[0].mxu0
  %483 = vdwg.mxu0
  %v484 = vmax.f32 %v478, 0.0
  %v485 = vmax.f32 %v481, 0.0
  %v486 = vld [vmem:[%s0 + $0x28] sm:$0xff]
  %v487 = vld [vmem:[%s0 + $0x70] sm:$0xff]
  %v490 = vunpack.c.l.b16 %v486
  %v491 = vunpack.c.h.b16 %v486
  %v492 = vunpack.c.l.b16 %v487
  %v493 = vunpack.c.h.b16 %v487
  %v494 = vpack.c.b16 %v492, %v490
  %v495 = vpack.c.b16 %v493, %v491
  %498 = vmatprep.subr.bf16.mxu0 0
  %499 = vmatpush1.bf16.msra.mxu0 %v166
  %500 = vmatprep.subr.bf16.mxu0 0
  %501 = vmatpush1.bf16.msra.mxu0 %v167
  %502 = vmatprep.subr.bf16.mxu0 0
  %503 = vmatpush1.bf16.msra.mxu0 %v168
  %504 = vmatprep.subr.bf16.mxu0 0
  %505 = vmatpush1.bf16.msra.mxu0 %v169
  %506 = vmatprep.subr.bf16.mxu0 0
  %507 = vmatpush1.bf16.msra.mxu0 %v170
  %508 = vmatprep.subr.bf16.mxu0 0
  %509 = vmatpush1.bf16.msra.mxu0 %v171
  %510 = vmatprep.subr.bf16.mxu0 0
  %511 = vmatpush1.bf16.msra.mxu0 %v172
  %512 = vmatprep.subr.bf16.mxu0 0
  %513 = vmatpush1.bf16.msra.mxu0 %v173
  %514 = vmatprep.subr.bf16.mxu0 0
  %515 = vmatpush1.bf16.msra.mxu0 %v174
  %516 = vmatprep.subr.bf16.mxu0 0
  %517 = vmatpush1.bf16.msra.mxu0 %v175
  %518 = vmatprep.subr.bf16.mxu0 0
  %519 = vmatpush1.bf16.msra.mxu0 %v176
  %520 = vmatprep.subr.bf16.mxu0 0
  %521 = vmatpush1.bf16.msra.mxu0 %v177
  %522 = vmatprep.subr.bf16.mxu0 0
  %523 = vmatpush1.bf16.msra.mxu0 %v178
  %524 = vmatprep.subr.bf16.mxu0 0
  %525 = vmatpush1.bf16.msra.mxu0 %v179
  %526 = vmatprep.subr.bf16.mxu0 0
  %527 = vmatpush1.bf16.msra.mxu0 %v180
  %528 = vmatprep.subr.bf16.mxu0 0
  %529 = vmatpush1.bf16.msra.mxu0 %v181
  %530 = vmatprep.mubr.bf16.mxu0 %v495
  %531 = vmatmul.mubr.bf16.gmra.mrb[0].mxu0 %v494
  %v532 = vpop.f32.mrb[0].mxu0
  %v533 = vadd.f32 %v90, %v532
  %v534 = vpop.f32.mrb[0].mxu0
  %v535 = vpop.f32.mrb[0].mxu0
  %v536 = vadd.f32 %v90, %v535
  %v537 = vpop.f32.mrb[0].mxu0
  %538 = vdwg.mxu0
  %v539 = vmax.f32 %v533, 0.0
  %v540 = vmax.f32 %v536, 0.0
  %543 = vrot.lane.b32.xlu0 %v539, 64
  %v544 = vpop.permute.xlu0 %543
  %545 = vrot.lane.b32.xlu0 %v540, 64
  %v546 = vpop.permute.xlu0 %545
  %v549 = vsel %vm304, %v484, %v544
  %v550 = vsel %vm304, %v485, %v546
  %551 = vst [vmem:[#allocation2 + $0x10] sm:$0xff] %v549
  %552 = vst [vmem:[#allocation2 + $0x30] sm:$0xff] %v550
  %v553 = vld [vmem:[%s0 + $0x30] sm:$0xff]
  %v554 = vld [vmem:[%s0 + $0x78] sm:$0xff]
  %v557 = vunpack.c.l.b16 %v553
  %v558 = vunpack.c.h.b16 %v553
  %v559 = vunpack.c.l.b16 %v554
  %v560 = vunpack.c.h.b16 %v554
  %v561 = vpack.c.b16 %v559, %v557
  %v562 = vpack.c.b16 %v560, %v558
  %565 = vmatprep.subr.bf16.mxu0 0
  %566 = vmatpush1.bf16.msra.mxu0 %v166
  %567 = vmatprep.subr.bf16.mxu0 0
  %568 = vmatpush1.bf16.msra.mxu0 %v167
  %569 = vmatprep.subr.bf16.mxu0 0
  %570 = vmatpush1.bf16.msra.mxu0 %v168
  %571 = vmatprep.subr.bf16.mxu0 0
  %572 = vmatpush1.bf16.msra.mxu0 %v169
  %573 = vmatprep.subr.bf16.mxu0 0
  %574 = vmatpush1.bf16.msra.mxu0 %v170
  %575 = vmatprep.subr.bf16.mxu0 0
  %576 = vmatpush1.bf16.msra.mxu0 %v171
  %577 = vmatprep.subr.bf16.mxu0 0
  %578 = vmatpush1.bf16.msra.mxu0 %v172
  %579 = vmatprep.subr.bf16.mxu0 0
  %580 = vmatpush1.bf16.msra.mxu0 %v173
  %581 = vmatprep.subr.bf16.mxu0 0
  %582 = vmatpush1.bf16.msra.mxu0 %v174
  %583 = vmatprep.subr.bf16.mxu0 0
  %584 = vmatpush1.bf16.msra.mxu0 %v175
  %585 = vmatprep.subr.bf16.mxu0 0
  %586 = vmatpush1.bf16.msra.mxu0 %v176
  %587 = vmatprep.subr.bf16.mxu0 0
  %588 = vmatpush1.bf16.msra.mxu0 %v177
  %589 = vmatprep.subr.bf16.mxu0 0
  %590 = vmatpush1.bf16.msra.mxu0 %v178
  %591 = vmatprep.subr.bf16.mxu0 0
  %592 = vmatpush1.bf16.msra.mxu0 %v179
  %593 = vmatprep.subr.bf16.mxu0 0
  %594 = vmatpush1.bf16.msra.mxu0 %v180
  %595 = vmatprep.subr.bf16.mxu0 0
  %596 = vmatpush1.bf16.msra.mxu0 %v181
  %597 = vmatprep.mubr.bf16.mxu0 %v562
  %598 = vmatmul.mubr.bf16.gmra.mrb[0].mxu0 %v561
  %v599 = vpop.f32.mrb[0].mxu0
  %v600 = vadd.f32 %v90, %v599
  %v601 = vpop.f32.mrb[0].mxu0
  %v602 = vpop.f32.mrb[0].mxu0
  %v603 = vadd.f32 %v90, %v602
  %v604 = vpop.f32.mrb[0].mxu0
  %605 = vdwg.mxu0
  %v606 = vmax.f32 %v600, 0.0
  %v607 = vmax.f32 %v603, 0.0
  %v608 = vld [vmem:[%s0 + $0x38] sm:$0xff]
  %v609 = vld [vmem:[%s0 + $0x80] sm:$0xff]
  %v612 = vunpack.c.l.b16 %v608
  %v613 = vunpack.c.h.b16 %v608
  %v614 = vunpack.c.l.b16 %v609
  %v615 = vunpack.c.h.b16 %v609
  %v616 = vpack.c.b16 %v614, %v612
  %v617 = vpack.c.b16 %v615, %v613
  %620 = vmatprep.subr.bf16.mxu0 0
  %621 = vmatpush1.bf16.msra.mxu0 %v166
  %622 = vmatprep.subr.bf16.mxu0 0
  %623 = vmatpush1.bf16.msra.mxu0 %v167
  %624 = vmatprep.subr.bf16.mxu0 0
  %625 = vmatpush1.bf16.msra.mxu0 %v168
  %626 = vmatprep.subr.bf16.mxu0 0
  %627 = vmatpush1.bf16.msra.mxu0 %v169
  %628 = vmatprep.subr.bf16.mxu0 0
  %629 = vmatpush1.bf16.msra.mxu0 %v170
  %630 = vmatprep.subr.bf16.mxu0 0
  %631 = vmatpush1.bf16.msra.mxu0 %v171
  %632 = vmatprep.subr.bf16.mxu0 0
  %633 = vmatpush1.bf16.msra.mxu0 %v172
  %634 = vmatprep.subr.bf16.mxu0 0
  %635 = vmatpush1.bf16.msra.mxu0 %v173
  %636 = vmatprep.subr.bf16.mxu0 0
  %637 = vmatpush1.bf16.msra.mxu0 %v174
  %638 = vmatprep.subr.bf16.mxu0 0
  %639 = vmatpush1.bf16.msra.mxu0 %v175
  %640 = vmatprep.subr.bf16.mxu0 0
  %641 = vmatpush1.bf16.msra.mxu0 %v176
  %642 = vmatprep.subr.bf16.mxu0 0
  %643 = vmatpush1.bf16.msra.mxu0 %v177
  %644 = vmatprep.subr.bf16.mxu0 0
  %645 = vmatpush1.bf16.msra.mxu0 %v178
  %646 = vmatprep.subr.bf16.mxu0 0
  %647 = vmatpush1.bf16.msra.mxu0 %v179
  %648 = vmatprep.subr.bf16.mxu0 0
  %649 = vmatpush1.bf16.msra.mxu0 %v180
  %650 = vmatprep.subr.bf16.mxu0 0
  %651 = vmatpush1.bf16.msra.mxu0 %v181
  %652 = vmatprep.mubr.bf16.mxu0 %v617
  %653 = vmatmul.mubr.bf16.gmra.mrb[0].mxu0 %v616
  %v654 = vpop.f32.mrb[0].mxu0
  %v655 = vadd.f32 %v90, %v654
  %v656 = vpop.f32.mrb[0].mxu0
  %v657 = vpop.f32.mrb[0].mxu0
  %v658 = vadd.f32 %v90, %v657
  %v659 = vpop.f32.mrb[0].mxu0
  %660 = vdwg.mxu0
  %v661 = vmax.f32 %v655, 0.0
  %v662 = vmax.f32 %v658, 0.0
  %665 = vrot.lane.b32.xlu0 %v661, 64
  %v666 = vpop.permute.xlu0 %665
  %667 = vrot.lane.b32.xlu0 %v662, 64
  %v668 = vpop.permute.xlu0 %667
  %v671 = vsel %vm304, %v606, %v666
  %v672 = vsel %vm304, %v607, %v668
  %673 = vst [vmem:[#allocation2 + $0x18] sm:$0xff] %v671
  %674 = vst [vmem:[#allocation2 + $0x38] sm:$0xff] %v672
  %v675 = vld [vmem:[%s0 + $0x40] sm:$0xff]
  %v676 = vld [vmem:[%s0 + $0x88] sm:$0xff]
  %v679 = vunpack.c.l.b16 %v675
  %v680 = vunpack.c.h.b16 %v675
  %v681 = vunpack.c.l.b16 %v676
  %v682 = vunpack.c.h.b16 %v676
  %v683 = vpack.c.b16 %v681, %v679
  %v684 = vpack.c.b16 %v682, %v680
  %687 = vmatprep.subr.bf16.mxu0 0
  %688 = vmatpush1.bf16.msra.mxu0 %v166
  %689 = vmatprep.subr.bf16.mxu0 0
  %690 = vmatpush1.bf16.msra.mxu0 %v167
  %691 = vmatprep.subr.bf16.mxu0 0
  %692 = vmatpush1.bf16.msra.mxu0 %v168
  %693 = vmatprep.subr.bf16.mxu0 0
  %694 = vmatpush1.bf16.msra.mxu0 %v169
  %695 = vmatprep.subr.bf16.mxu0 0
  %696 = vmatpush1.bf16.msra.mxu0 %v170
  %697 = vmatprep.subr.bf16.mxu0 0
  %698 = vmatpush1.bf16.msra.mxu0 %v171
  %699 = vmatprep.subr.bf16.mxu0 0
  %700 = vmatpush1.bf16.msra.mxu0 %v172
  %701 = vmatprep.subr.bf16.mxu0 0
  %702 = vmatpush1.bf16.msra.mxu0 %v173
  %703 = vmatprep.subr.bf16.mxu0 0
  %704 = vmatpush1.bf16.msra.mxu0 %v174
  %705 = vmatprep.subr.bf16.mxu0 0
  %706 = vmatpush1.bf16.msra.mxu0 %v175
  %707 = vmatprep.subr.bf16.mxu0 0
  %708 = vmatpush1.bf16.msra.mxu0 %v176
  %709 = vmatprep.subr.bf16.mxu0 0
  %710 = vmatpush1.bf16.msra.mxu0 %v177
  %711 = vmatprep.subr.bf16.mxu0 0
  %712 = vmatpush1.bf16.msra.mxu0 %v178
  %713 = vmatprep.subr.bf16.mxu0 0
  %714 = vmatpush1.bf16.msra.mxu0 %v179
  %715 = vmatprep.subr.bf16.mxu0 0
  %716 = vmatpush1.bf16.msra.mxu0 %v180
  %717 = vmatprep.subr.bf16.mxu0 0
  %718 = vmatpush1.bf16.msra.mxu0 %v181
  %719 = vmatprep.mubr.bf16.mxu0 %v684
  %720 = vmatmul.mubr.bf16.gmra.mrb[0].mxu0 %v683
  %v721 = vpop.f32.mrb[0].mxu0
  %v722 = vadd.f32 %v90, %v721
  %v723 = vpop.f32.mrb[0].mxu0
  %v724 = vpop.f32.mrb[0].mxu0
  %v725 = vadd.f32 %v90, %v724
  %v726 = vpop.f32.mrb[0].mxu0
  %727 = vdwg.mxu0
  %v728 = vmax.f32 %v722, 0.0
  %v729 = vmax.f32 %v725, 0.0
  %v730 = vpack.c.bf16 %v729, %v728
  %v731 = vld [vmem:[%s5 + $0x100] sm:$0xf]
  %v732 = vld [vmem:[%s5 + $0x104] sm:$0xf]
  %v733 = vld [vmem:[%s5 + $0x108] sm:$0xf]
  %v734 = vld [vmem:[%s5 + $0x10c] sm:$0xf]
  %v735 = vld [vmem:[%s5 + $0x110] sm:$0xf]
  %v736 = vld [vmem:[%s5 + $0x114] sm:$0xf]
  %v737 = vld [vmem:[%s5 + $0x118] sm:$0xf]
  %v738 = vld [vmem:[%s5 + $0x11c] sm:$0xf]
  %v739 = vld [vmem:[#allocation2] sm:$0xff]
  %v740 = vld [vmem:[#allocation2 + $0x8] sm:$0xff]
  %v741 = vld [vmem:[#allocation2 + $0x20] sm:$0xff]
  %v742 = vld [vmem:[#allocation2 + $0x28] sm:$0xff]
  %v743 = vpack.c.bf16 %v741, %v739
  %v744 = vpack.c.bf16 %v742, %v740
  %v745 = vld [vmem:[%s5] sm:$0xf]
  %v746 = vld [vmem:[%s5 + $0x4] sm:$0xf]
  %v747 = vld [vmem:[%s5 + $0x8] sm:$0xf]
  %v748 = vld [vmem:[%s5 + $0xc] sm:$0xf]
  %v749 = vld [vmem:[%s5 + $0x10] sm:$0xf]
  %v750 = vld [vmem:[%s5 + $0x14] sm:$0xf]
  %v751 = vld [vmem:[%s5 + $0x18] sm:$0xf]
  %v752 = vld [vmem:[%s5 + $0x1c] sm:$0xf]
  %v753 = vld [vmem:[%s5 + $0x20] sm:$0xf]
  %v754 = vld [vmem:[%s5 + $0x24] sm:$0xf]
  %v755 = vld [vmem:[%s5 + $0x28] sm:$0xf]
  %v756 = vld [vmem:[%s5 + $0x2c] sm:$0xf]
  %v757 = vld [vmem:[%s5 + $0x30] sm:$0xf]
  %v758 = vld [vmem:[%s5 + $0x34] sm:$0xf]
  %v759 = vld [vmem:[%s5 + $0x38] sm:$0xf]
  %v760 = vld [vmem:[%s5 + $0x3c] sm:$0xf]
  %v761 = vld [vmem:[%s5 + $0x40] sm:$0xf]
  %v762 = vld [vmem:[%s5 + $0x44] sm:$0xf]
  %v763 = vld [vmem:[%s5 + $0x48] sm:$0xf]
  %v764 = vld [vmem:[%s5 + $0x4c] sm:$0xf]
  %v765 = vld [vmem:[%s5 + $0x50] sm:$0xf]
  %v766 = vld [vmem:[%s5 + $0x54] sm:$0xf]
  %v767 = vld [vmem:[%s5 + $0x58] sm:$0xf]
  %v768 = vld [vmem:[%s5 + $0x5c] sm:$0xf]
  %v769 = vld [vmem:[%s5 + $0x60] sm:$0xf]
  %v770 = vld [vmem:[%s5 + $0x64] sm:$0xf]
  %v771 = vld [vmem:[%s5 + $0x68] sm:$0xf]
  %v772 = vld [vmem:[%s5 + $0x6c] sm:$0xf]
  %v773 = vld [vmem:[%s5 + $0x70] sm:$0xf]
  %v774 = vld [vmem:[%s5 + $0x74] sm:$0xf]
  %v775 = vld [vmem:[%s5 + $0x78] sm:$0xf]
  %v776 = vld [vmem:[%s5 + $0x7c] sm:$0xf]
  %v809 = vunpack.c.l.b16 %v745
  %v810 = vunpack.c.l.b16 %v746
  %v811 = vunpack.c.l.b16 %v747
  %v812 = vunpack.c.l.b16 %v748
  %v813 = vunpack.c.l.b16 %v749
  %v814 = vunpack.c.l.b16 %v750
  %v815 = vunpack.c.l.b16 %v751
  %v816 = vunpack.c.l.b16 %v752
  %v817 = vunpack.c.l.b16 %v753
  %v818 = vunpack.c.l.b16 %v754
  %v819 = vunpack.c.l.b16 %v755
  %v820 = vunpack.c.l.b16 %v756
  %v821 = vunpack.c.l.b16 %v757
  %v822 = vunpack.c.l.b16 %v758
  %v823 = vunpack.c.l.b16 %v759
  %v824 = vunpack.c.l.b16 %v760
  %v825 = vunpack.c.l.b16 %v761
  %v826 = vunpack.c.l.b16 %v762
  %v827 = vunpack.c.l.b16 %v763
  %v828 = vunpack.c.l.b16 %v764
  %v829 = vunpack.c.l.b16 %v765
  %v830 = vunpack.c.l.b16 %v766
  %v831 = vunpack.c.l.b16 %v767
  %v832 = vunpack.c.l.b16 %v768
  %v833 = vunpack.c.l.b16 %v769
  %v834 = vunpack.c.l.b16 %v770
  %v835 = vunpack.c.l.b16 %v771
  %v836 = vunpack.c.l.b16 %v772
  %v837 = vunpack.c.l.b16 %v773
  %v838 = vunpack.c.l.b16 %v774
  %v839 = vunpack.c.l.b16 %v775
  %v840 = vunpack.c.l.b16 %v776
  %v841 = vpack.c.b16 %v810, %v809
  %v842 = vpack.c.b16 %v812, %v811
  %v843 = vpack.c.b16 %v814, %v813
  %v844 = vpack.c.b16 %v816, %v815
  %v845 = vpack.c.b16 %v818, %v817
  %v846 = vpack.c.b16 %v820, %v819
  %v847 = vpack.c.b16 %v822, %v821
  %v848 = vpack.c.b16 %v824, %v823
  %v849 = vpack.c.b16 %v826, %v825
  %v850 = vpack.c.b16 %v828, %v827
  %v851 = vpack.c.b16 %v830, %v829
  %v852 = vpack.c.b16 %v832, %v831
  %v853 = vpack.c.b16 %v834, %v833
  %v854 = vpack.c.b16 %v836, %v835
  %v855 = vpack.c.b16 %v838, %v837
  %v856 = vpack.c.b16 %v840, %v839
  %873 = vmatprep.subr.bf16.mxu0 0
  %874 = vmatpush1.bf16.msra.mxu0 %v841
  %875 = vmatprep.subr.bf16.mxu0 0
  %876 = vmatpush1.bf16.msra.mxu0 %v842
  %877 = vmatprep.subr.bf16.mxu0 0
  %878 = vmatpush1.bf16.msra.mxu0 %v843
  %879 = vmatprep.subr.bf16.mxu0 0
  %880 = vmatpush1.bf16.msra.mxu0 %v844
  %881 = vmatprep.subr.bf16.mxu0 0
  %882 = vmatpush1.bf16.msra.mxu0 %v845
  %883 = vmatprep.subr.bf16.mxu0 0
  %884 = vmatpush1.bf16.msra.mxu0 %v846
  %885 = vmatprep.subr.bf16.mxu0 0
  %886 = vmatpush1.bf16.msra.mxu0 %v847
  %887 = vmatprep.subr.bf16.mxu0 0
  %888 = vmatpush1.bf16.msra.mxu0 %v848
  %889 = vmatprep.subr.bf16.mxu0 0
  %890 = vmatpush1.bf16.msra.mxu0 %v849
  %891 = vmatprep.subr.bf16.mxu0 0
  %892 = vmatpush1.bf16.msra.mxu0 %v850
  %893 = vmatprep.subr.bf16.mxu0 0
  %894 = vmatpush1.bf16.msra.mxu0 %v851
  %895 = vmatprep.subr.bf16.mxu0 0
  %896 = vmatpush1.bf16.msra.mxu0 %v852
  %897 = vmatprep.subr.bf16.mxu0 0
  %898 = vmatpush1.bf16.msra.mxu0 %v853
  %899 = vmatprep.subr.bf16.mxu0 0
  %900 = vmatpush1.bf16.msra.mxu0 %v854
  %901 = vmatprep.subr.bf16.mxu0 0
  %902 = vmatpush1.bf16.msra.mxu0 %v855
  %903 = vmatprep.subr.bf16.mxu0 0
  %904 = vmatpush1.bf16.msra.mxu0 %v856
  %905 = vmatprep.mubr.bf16.mxu0 %v744
  %906 = vmatmul.mubr.bf16.gmra.mrb[0].mxu0 %v743
  %v907 = vpop.f32.mrb[0].mxu0
  %v908 = vadd.f32 0.0, %v907
  %v909 = vpop.f32.mrb[0].mxu0
  %v910 = vpop.f32.mrb[0].mxu0
  %v911 = vadd.f32 0.0, %v910
  %v912 = vpop.f32.mrb[0].mxu0
  %913 = vdwg.mxu0
  %v922 = vunpack.c.l.b16 %v731
  %v923 = vunpack.c.l.b16 %v732
  %v924 = vunpack.c.l.b16 %v733
  %v925 = vunpack.c.l.b16 %v734
  %v926 = vunpack.c.l.b16 %v735
  %v927 = vunpack.c.l.b16 %v736
  %v928 = vunpack.c.l.b16 %v737
  %v929 = vunpack.c.l.b16 %v738
  %v930 = vpack.c.b16 %v923, %v922
  %v931 = vpack.c.b16 %v925, %v924
  %v932 = vpack.c.b16 %v927, %v926
  %v933 = vpack.c.b16 %v929, %v928
  %v939 = vsel %vm304, %v730, 0
  %941 = vmatprep.subr.bf16.mxu0 0
  %942 = vmatpush1.bf16.msra.mxu0 %v930
  %943 = vmatprep.subr.bf16.mxu0 0
  %944 = vmatpush1.bf16.msra.mxu0 %v931
  %945 = vmatprep.subr.bf16.mxu0 0
  %946 = vmatpush1.bf16.msra.mxu0 %v932
  %947 = vmatprep.subr.bf16.mxu0 0
  %948 = vmatpush1.bf16.msra.mxu0 %v933
  %949 = vmatprep.subr.bf16.mxu0 0
  %950 = vmatpush1.bf16.msra.mxu0 0
  %951 = vmatprep.subr.bf16.mxu0 0
  %952 = vmatpush1.bf16.msra.mxu0 0
  %953 = vmatprep.subr.bf16.mxu0 0
  %954 = vmatpush1.bf16.msra.mxu0 0
  %955 = vmatprep.subr.bf16.mxu0 0
  %956 = vmatpush1.bf16.msra.mxu0 0
  %957 = vmatprep.subr.bf16.mxu0 0
  %958 = vmatpush1.bf16.msra.mxu0 0
  %959 = vmatprep.subr.bf16.mxu0 0
  %960 = vmatpush1.bf16.msra.mxu0 0
  %961 = vmatprep.subr.bf16.mxu0 0
  %962 = vmatpush1.bf16.msra.mxu0 0
  %963 = vmatprep.subr.bf16.mxu0 0
  %964 = vmatpush1.bf16.msra.mxu0 0
  %965 = vmatprep.subr.bf16.mxu0 0
  %966 = vmatpush1.bf16.msra.mxu0 0
  %967 = vmatprep.subr.bf16.mxu0 0
  %968 = vmatpush1.bf16.msra.mxu0 0
  %969 = vmatprep.subr.bf16.mxu0 0
  %970 = vmatpush1.bf16.msra.mxu0 0
  %971 = vmatprep.subr.bf16.mxu0 0
  %972 = vmatpush1.bf16.msra.mxu0 0
  %973 = vmatprep.mubr.bf16.mxu0 0
  %974 = vmatmul.mubr.bf16.gmra.mrb[0].mxu0 %v939
  %v975 = vpop.f32.mrb[0].mxu0
  %v976 = vadd.f32 %v908, %v975
  %v977 = vpop.f32.mrb[0].mxu0
  %v978 = vpop.f32.mrb[0].mxu0
  %v979 = vadd.f32 %v911, %v978
  %v980 = vpop.f32.mrb[0].mxu0
  %981 = vdwg.mxu0
  %v982 = vld [vmem:[#allocation2 + $0x10] sm:$0xff]
  %v983 = vld [vmem:[#allocation2 + $0x18] sm:$0xff]
  %v984 = vld [vmem:[#allocation2 + $0x30] sm:$0xff]
  %v985 = vld [vmem:[#allocation2 + $0x38] sm:$0xff]
  %v986 = vpack.c.bf16 %v984, %v982
  %v987 = vpack.c.bf16 %v985, %v983
  %v988 = vld [vmem:[%s5 + $0x80] sm:$0xf]
  %v989 = vld [vmem:[%s5 + $0x84] sm:$0xf]
  %v990 = vld [vmem:[%s5 + $0x88] sm:$0xf]
  %v991 = vld [vmem:[%s5 + $0x8c] sm:$0xf]
  %v992 = vld [vmem:[%s5 + $0x90] sm:$0xf]
  %v993 = vld [vmem:[%s5 + $0x94] sm:$0xf]
  %v994 = vld [vmem:[%s5 + $0x98] sm:$0xf]
  %v995 = vld [vmem:[%s5 + $0x9c] sm:$0xf]
  %v996 = vld [vmem:[%s5 + $0xa0] sm:$0xf]
  %v997 = vld [vmem:[%s5 + $0xa4] sm:$0xf]
  %v998 = vld [vmem:[%s5 + $0xa8] sm:$0xf]
  %v999 = vld [vmem:[%s5 + $0xac] sm:$0xf]
  %v1000 = vld [vmem:[%s5 + $0xb0] sm:$0xf]
  %v1001 = vld [vmem:[%s5 + $0xb4] sm:$0xf]
  %v1002 = vld [vmem:[%s5 + $0xb8] sm:$0xf]
  %v1003 = vld [vmem:[%s5 + $0xbc] sm:$0xf]
  %v1004 = vld [vmem:[%s5 + $0xc0] sm:$0xf]
  %v1005 = vld [vmem:[%s5 + $0xc4] sm:$0xf]
  %v1006 = vld [vmem:[%s5 + $0xc8] sm:$0xf]
  %v1007 = vld [vmem:[%s5 + $0xcc] sm:$0xf]
  %v1008 = vld [vmem:[%s5 + $0xd0] sm:$0xf]
  %v1009 = vld [vmem:[%s5 + $0xd4] sm:$0xf]
  %v1010 = vld [vmem:[%s5 + $0xd8] sm:$0xf]
  %v1011 = vld [vmem:[%s5 + $0xdc] sm:$0xf]
  %v1012 = vld [vmem:[%s5 + $0xe0] sm:$0xf]
  %v1013 = vld [vmem:[%s5 + $0xe4] sm:$0xf]
  %v1014 = vld [vmem:[%s5 + $0xe8] sm:$0xf]
  %v1015 = vld [vmem:[%s5 + $0xec] sm:$0xf]
  %v1016 = vld [vmem:[%s5 + $0xf0] sm:$0xf]
  %v1017 = vld [vmem:[%s5 + $0xf4] sm:$0xf]
  %v1018 = vld [vmem:[%s5 + $0xf8] sm:$0xf]
  %v1019 = vld [vmem:[%s5 + $0xfc] sm:$0xf]
  %v1052 = vunpack.c.l.b16 %v988
  %v1053 = vunpack.c.l.b16 %v989
  %v1054 = vunpack.c.l.b16 %v990
  %v1055 = vunpack.c.l.b16 %v991
  %v1056 = vunpack.c.l.b16 %v992
  %v1057 = vunpack.c.l.b16 %v993
  %v1058 = vunpack.c.l.b16 %v994
  %v1059 = vunpack.c.l.b16 %v995
  %v1060 = vunpack.c.l.b16 %v996
  %v1061 = vunpack.c.l.b16 %v997
  %v1062 = vunpack.c.l.b16 %v998
  %v1063 = vunpack.c.l.b16 %v999
  %v1064 = vunpack.c.l.b16 %v1000
  %v1065 = vunpack.c.l.b16 %v1001
  %v1066 = vunpack.c.l.b16 %v1002
  %v1067 = vunpack.c.l.b16 %v1003
  %v1068 = vunpack.c.l.b16 %v1004
  %v1069 = vunpack.c.l.b16 %v1005
  %v1070 = vunpack.c.l.b16 %v1006
  %v1071 = vunpack.c.l.b16 %v1007
  %v1072 = vunpack.c.l.b16 %v1008
  %v1073 = vunpack.c.l.b16 %v1009
  %v1074 = vunpack.c.l.b16 %v1010
  %v1075 = vunpack.c.l.b16 %v1011
  %v1076 = vunpack.c.l.b16 %v1012
  %v1077 = vunpack.c.l.b16 %v1013
  %v1078 = vunpack.c.l.b16 %v1014
  %v1079 = vunpack.c.l.b16 %v1015
  %v1080 = vunpack.c.l.b16 %v1016
  %v1081 = vunpack.c.l.b16 %v1017
  %v1082 = vunpack.c.l.b16 %v1018
  %v1083 = vunpack.c.l.b16 %v1019
  %v1084 = vpack.c.b16 %v1053, %v1052
  %v1085 = vpack.c.b16 %v1055, %v1054
  %v1086 = vpack.c.b16 %v1057, %v1056
  %v1087 = vpack.c.b16 %v1059, %v1058
  %v1088 = vpack.c.b16 %v1061, %v1060
  %v1089 = vpack.c.b16 %v1063, %v1062
  %v1090 = vpack.c.b16 %v1065, %v1064
  %v1091 = vpack.c.b16 %v1067, %v1066
  %v1092 = vpack.c.b16 %v1069, %v1068
  %v1093 = vpack.c.b16 %v1071, %v1070
  %v1094 = vpack.c.b16 %v1073, %v1072
  %v1095 = vpack.c.b16 %v1075, %v1074
  %v1096 = vpack.c.b16 %v1077, %v1076
  %v1097 = vpack.c.b16 %v1079, %v1078
  %v1098 = vpack.c.b16 %v1081, %v1080
  %v1099 = vpack.c.b16 %v1083, %v1082
  %1116 = vmatprep.subr.bf16.mxu0 0
  %1117 = vmatpush1.bf16.msra.mxu0 %v1084
  %1118 = vmatprep.subr.bf16.mxu0 0
  %1119 = vmatpush1.bf16.msra.mxu0 %v1085
  %1120 = vmatprep.subr.bf16.mxu0 0
  %1121 = vmatpush1.bf16.msra.mxu0 %v1086
  %1122 = vmatprep.subr.bf16.mxu0 0
  %1123 = vmatpush1.bf16.msra.mxu0 %v1087
  %1124 = vmatprep.subr.bf16.mxu0 0
  %1125 = vmatpush1.bf16.msra.mxu0 %v1088
  %1126 = vmatprep.subr.bf16.mxu0 0
  %1127 = vmatpush1.bf16.msra.mxu0 %v1089
  %1128 = vmatprep.subr.bf16.mxu0 0
  %1129 = vmatpush1.bf16.msra.mxu0 %v1090
  %1130 = vmatprep.subr.bf16.mxu0 0
  %1131 = vmatpush1.bf16.msra.mxu0 %v1091
  %1132 = vmatprep.subr.bf16.mxu0 0
  %1133 = vmatpush1.bf16.msra.mxu0 %v1092
  %1134 = vmatprep.subr.bf16.mxu0 0
  %1135 = vmatpush1.bf16.msra.mxu0 %v1093
  %1136 = vmatprep.subr.bf16.mxu0 0
  %1137 = vmatpush1.bf16.msra.mxu0 %v1094
  %1138 = vmatprep.subr.bf16.mxu0 0
  %1139 = vmatpush1.bf16.msra.mxu0 %v1095
  %1140 = vmatprep.subr.bf16.mxu0 0
  %1141 = vmatpush1.bf16.msra.mxu0 %v1096
  %1142 = vmatprep.subr.bf16.mxu0 0
  %1143 = vmatpush1.bf16.msra.mxu0 %v1097
  %1144 = vmatprep.subr.bf16.mxu0 0
  %1145 = vmatpush1.bf16.msra.mxu0 %v1098
  %1146 = vmatprep.subr.bf16.mxu0 0
  %1147 = vmatpush1.bf16.msra.mxu0 %v1099
  %1148 = vmatprep.mubr.bf16.mxu0 %v987
  %1149 = vmatmul.mubr.bf16.gmra.mrb[0].mxu0 %v986
  %v1150 = vpop.f32.mrb[0].mxu0
  %v1151 = vadd.f32 0.0, %v1150
  %v1152 = vpop.f32.mrb[0].mxu0
  %v1153 = vpop.f32.mrb[0].mxu0
  %v1154 = vadd.f32 0.0, %v1153
  %v1155 = vpop.f32.mrb[0].mxu0
  %1156 = vdwg.mxu0
  %v1157 = vadd.f32 %v976, %v1151
  %v1158 = vadd.f32 %v979, %v1154
  %v1159 = vld [vmem:[%s6] sm:$0x1]
  %v1161 = vlaneseq
  %v1162 = vshrl.u32 %v1161, 7
  %v1163 = vsub.s32 0, %v1162
  %v1164 = vrot.slane %v1159, %v1163
  %v1166 = vadd.f32 %v1157, %v1164
  %v1167 = vadd.f32 %v1158, %v1164
  %v1168 = vmax.f32 %v1166, 0.0
  %v1169 = vmax.f32 %v1167, 0.0
  %v1170 = vld [vmem:[%s1] sm:$0xf]
  %v1171 = vld [vmem:[%s1 + $0x4] sm:$0xf]
  %v1172 = vld [vmem:[%s7] sm:$0xff]
  %v1173 = vld [vmem:[%s7 + $0x8] sm:$0xff]
  %v1174 = vld [vmem:[%s7 + $0x10] sm:$0xff]
  %v1175 = vld [vmem:[%s7 + $0x18] sm:$0xff]
  %v1176 = vld [vmem:[%s7 + $0x20] sm:$0xff]
  %v1177 = vld [vmem:[%s7 + $0x28] sm:$0xff]
  %v1178 = vld [vmem:[%s7 + $0x30] sm:$0xff]
  %v1179 = vld [vmem:[%s7 + $0x38] sm:$0xff]
  %v1180 = vld [vmem:[%s7 + $0x40] sm:$0xff]
  %v1181 = vld [vmem:[%s7 + $0x48] sm:$0xff]
  %v1182 = vld [vmem:[%s7 + $0x50] sm:$0xff]
  %v1183 = vld [vmem:[%s7 + $0x58] sm:$0xff]
  %v1184 = vld [vmem:[%s7 + $0x60] sm:$0xff]
  %v1185 = vld [vmem:[%s7 + $0x68] sm:$0xff]
  %v1186 = vld [vmem:[%s7 + $0x70] sm:$0xff]
  %v1187 = vld [vmem:[%s7 + $0x78] sm:$0xff]
  %v1188 = vld [vmem:[%s7 + $0x80] sm:$0xff]
  %v1189 = vld [vmem:[%s7 + $0x88] sm:$0xff]
  %v1190 = vld [vmem:[%s7 + $0x90] sm:$0xff]
  %v1191 = vld [vmem:[%s7 + $0x98] sm:$0xff]
  %v1192 = vld [vmem:[%s7 + $0xa0] sm:$0xff]
  %v1193 = vld [vmem:[%s7 + $0xa8] sm:$0xff]
  %v1194 = vld [vmem:[%s7 + $0xb0] sm:$0xff]
  %v1195 = vld [vmem:[%s7 + $0xb8] sm:$0xff]
  %v1196 = vld [vmem:[%s7 + $0xc0] sm:$0xff]
  %v1197 = vld [vmem:[%s7 + $0xc8] sm:$0xff]
  %v1198 = vld [vmem:[%s7 + $0xd0] sm:$0xff]
  %v1199 = vld [vmem:[%s7 + $0xd8] sm:$0xff]
  %v1200 = vld [vmem:[%s7 + $0xe0] sm:$0xff]
  %v1201 = vld [vmem:[%s7 + $0xe8] sm:$0xff]
  %v1202 = vld [vmem:[%s7 + $0xf0] sm:$0xff]
  %v1203 = vld [vmem:[%s7 + $0xf8] sm:$0xff]
  %v1204 = vld [vmem:[%s7 + $0x100] sm:$0xff]
  %v1205 = vld [vmem:[%s7 + $0x108] sm:$0xff]
  %v1206 = vld [vmem:[%s7 + $0x110] sm:$0xff]
  %v1207 = vld [vmem:[%s7 + $0x118] sm:$0xff]
  %v1208 = vld [vmem:[%s7 + $0x120] sm:$0xff]
  %v1209 = vld [vmem:[%s7 + $0x128] sm:$0xff]
  %v1210 = vld [vmem:[%s7 + $0x130] sm:$0xff]
  %v1211 = vld [vmem:[%s7 + $0x138] sm:$0xff]
  %v1212 = vld [vmem:[%s7 + $0x140] sm:$0xff]
  %v1213 = vld [vmem:[%s7 + $0x148] sm:$0xff]
  %v1214 = vld [vmem:[%s7 + $0x150] sm:$0xff]
  %v1215 = vld [vmem:[%s7 + $0x158] sm:$0xff]
  %v1216 = vld [vmem:[%s7 + $0x160] sm:$0xff]
  %v1217 = vld [vmem:[%s7 + $0x168] sm:$0xff]
  %v1218 = vld [vmem:[%s7 + $0x170] sm:$0xff]
  %v1219 = vld [vmem:[%s7 + $0x178] sm:$0xff]
  %v1220 = vld [vmem:[%s8] sm:$0x3f]
  %v1222 = vlaneseq
  %v1223 = vshrl.u32 %v1222, 7
  %v1224 = vsub.s32 0, %v1223
  %v1225 = vrot.slane %v1220, %v1224
  %v1226 = vlaneseq
  %v1227 = vshrl.u32 %v1226, 7
  %v1228 = vsub.s32 1, %v1227
  %v1229 = vrot.slane %v1220, %v1228
  %v1230 = vlaneseq
  %v1231 = vshrl.u32 %v1230, 7
  %v1232 = vsub.s32 2, %v1231
  %v1233 = vrot.slane %v1220, %v1232
  %v1234 = vlaneseq
  %v1235 = vshrl.u32 %v1234, 7
  %v1236 = vsub.s32 3, %v1235
  %v1237 = vrot.slane %v1220, %v1236
  %v1238 = vlaneseq
  %v1239 = vshrl.u32 %v1238, 7
  %v1240 = vsub.s32 4, %v1239
  %v1241 = vrot.slane %v1220, %v1240
  %v1242 = vlaneseq
  %v1243 = vshrl.u32 %v1242, 7
  %v1244 = vsub.s32 5, %v1243
  %v1245 = vrot.slane %v1220, %v1244
  %v1254 = vunpack.c.l.b16 %v1170
  %v1255 = vunpack.c.l.b16 %v1171
  %v1256 = vpack.c.b16 %v1255, %v1254
  %v1306 = vunpack.c.l.b16 %v1172
  %v1307 = vunpack.c.h.b16 %v1172
  %v1308 = vunpack.c.l.b16 %v1173
  %v1309 = vunpack.c.h.b16 %v1173
  %v1310 = vunpack.c.l.b16 %v1174
  %v1311 = vunpack.c.h.b16 %v1174
  %v1312 = vunpack.c.l.b16 %v1175
  %v1313 = vunpack.c.h.b16 %v1175
  %v1314 = vunpack.c.l.b16 %v1176
  %v1315 = vunpack.c.h.b16 %v1176
  %v1316 = vunpack.c.l.b16 %v1177
  %v1317 = vunpack.c.h.b16 %v1177
  %v1318 = vunpack.c.l.b16 %v1178
  %v1319 = vunpack.c.h.b16 %v1178
  %v1320 = vunpack.c.l.b16 %v1179
  %v1321 = vunpack.c.h.b16 %v1179
  %v1322 = vunpack.c.l.b16 %v1180
  %v1323 = vunpack.c.h.b16 %v1180
  %v1324 = vunpack.c.l.b16 %v1181
  %v1325 = vunpack.c.h.b16 %v1181
  %v1326 = vunpack.c.l.b16 %v1182
  %v1327 = vunpack.c.h.b16 %v1182
  %v1328 = vunpack.c.l.b16 %v1183
  %v1329 = vunpack.c.h.b16 %v1183
  %v1330 = vunpack.c.l.b16 %v1184
  %v1331 = vunpack.c.h.b16 %v1184
  %v1332 = vunpack.c.l.b16 %v1185
  %v1333 = vunpack.c.h.b16 %v1185
  %v1334 = vunpack.c.l.b16 %v1186
  %v1335 = vunpack.c.h.b16 %v1186
  %v1336 = vunpack.c.l.b16 %v1187
  %v1337 = vunpack.c.h.b16 %v1187
  %v1338 = vunpack.c.l.b16 %v1188
  %v1339 = vunpack.c.h.b16 %v1188
  %v1340 = vunpack.c.l.b16 %v1189
  %v1341 = vunpack.c.h.b16 %v1189
  %v1342 = vunpack.c.l.b16 %v1190
  %v1343 = vunpack.c.h.b16 %v1190
  %v1344 = vunpack.c.l.b16 %v1191
  %v1345 = vunpack.c.h.b16 %v1191
  %v1346 = vunpack.c.l.b16 %v1192
  %v1347 = vunpack.c.h.b16 %v1192
  %v1348 = vunpack.c.l.b16 %v1193
  %v1349 = vunpack.c.h.b16 %v1193
  %v1350 = vunpack.c.l.b16 %v1194
  %v1351 = vunpack.c.h.b16 %v1194
  %v1352 = vunpack.c.l.b16 %v1195
  %v1353 = vunpack.c.h.b16 %v1195
  %v1354 = vunpack.c.l.b16 %v1196
  %v1355 = vunpack.c.h.b16 %v1196
  %v1356 = vunpack.c.l.b16 %v1197
  %v1357 = vunpack.c.h.b16 %v1197
  %v1358 = vunpack.c.l.b16 %v1198
  %v1359 = vunpack.c.h.b16 %v1198
  %v1360 = vunpack.c.l.b16 %v1199
  %v1361 = vunpack.c.h.b16 %v1199
  %v1362 = vunpack.c.l.b16 %v1200
  %v1363 = vunpack.c.h.b16 %v1200
  %v1364 = vunpack.c.l.b16 %v1201
  %v1365 = vunpack.c.h.b16 %v1201
  %v1366 = vunpack.c.l.b16 %v1202
  %v1367 = vunpack.c.h.b16 %v1202
  %v1368 = vunpack.c.l.b16 %v1203
  %v1369 = vunpack.c.h.b16 %v1203
  %v1370 = vunpack.c.l.b16 %v1204
  %v1371 = vunpack.c.h.b16 %v1204
  %v1372 = vunpack.c.l.b16 %v1205
  %v1373 = vunpack.c.h.b16 %v1205
  %v1374 = vunpack.c.l.b16 %v1206
  %v1375 = vunpack.c.h.b16 %v1206
  %v1376 = vunpack.c.l.b16 %v1207
  %v1377 = vunpack.c.h.b16 %v1207
  %v1378 = vunpack.c.l.b16 %v1208
  %v1379 = vunpack.c.h.b16 %v1208
  %v1380 = vunpack.c.l.b16 %v1209
  %v1381 = vunpack.c.h.b16 %v1209
  %v1382 = vunpack.c.l.b16 %v1210
  %v1383 = vunpack.c.h.b16 %v1210
  %v1384 = vunpack.c.l.b16 %v1211
  %v1385 = vunpack.c.h.b16 %v1211
  %v1386 = vunpack.c.l.b16 %v1212
  %v1387 = vunpack.c.h.b16 %v1212
  %v1388 = vunpack.c.l.b16 %v1213
  %v1389 = vunpack.c.h.b16 %v1213
  %v1390 = vunpack.c.l.b16 %v1214
  %v1391 = vunpack.c.h.b16 %v1214
  %v1392 = vunpack.c.l.b16 %v1215
  %v1393 = vunpack.c.h.b16 %v1215
  %v1394 = vunpack.c.l.b16 %v1216
  %v1395 = vunpack.c.h.b16 %v1216
  %v1396 = vunpack.c.l.b16 %v1217
  %v1397 = vunpack.c.h.b16 %v1217
  %v1398 = vunpack.c.l.b16 %v1218
  %v1399 = vunpack.c.h.b16 %v1218
  %v1400 = vunpack.c.l.b16 %v1219
  %v1401 = vunpack.c.h.b16 %v1219
  %v1402 = vpack.c.b16 %v1312, %v1306
  %v1403 = vpack.c.b16 %v1313, %v1307
  %v1404 = vpack.c.b16 %v1314, %v1308
  %v1405 = vpack.c.b16 %v1315, %v1309
  %v1406 = vpack.c.b16 %v1316, %v1310
  %v1407 = vpack.c.b16 %v1317, %v1311
  %v1408 = vpack.c.b16 %v1324, %v1318
  %v1409 = vpack.c.b16 %v1325, %v1319
  %v1410 = vpack.c.b16 %v1326, %v1320
  %v1411 = vpack.c.b16 %v1327, %v1321
  %v1412 = vpack.c.b16 %v1328, %v1322
  %v1413 = vpack.c.b16 %v1329, %v1323
  %v1414 = vpack.c.b16 %v1336, %v1330
  %v1415 = vpack.c.b16 %v1337, %v1331
  %v1416 = vpack.c.b16 %v1338, %v1332
  %v1417 = vpack.c.b16 %v1339, %v1333
  %v1418 = vpack.c.b16 %v1340, %v1334
  %v1419 = vpack.c.b16 %v1341, %v1335
  %v1420 = vpack.c.b16 %v1348, %v1342
  %v1421 = vpack.c.b16 %v1349, %v1343
  %v1422 = vpack.c.b16 %v1350, %v1344
  %v1423 = vpack.c.b16 %v1351, %v1345
  %v1424 = vpack.c.b16 %v1352, %v1346
  %v1425 = vpack.c.b16 %v1353, %v1347
  %v1426 = vpack.c.b16 %v1360, %v1354
  %v1427 = vpack.c.b16 %v1361, %v1355
  %v1428 = vpack.c.b16 %v1362, %v1356
  %v1429 = vpack.c.b16 %v1363, %v1357
  %v1430 = vpack.c.b16 %v1364, %v1358
  %v1431 = vpack.c.b16 %v1365, %v1359
  %v1432 = vpack.c.b16 %v1372, %v1366
  %v1433 = vpack.c.b16 %v1373, %v1367
  %v1434 = vpack.c.b16 %v1374, %v1368
  %v1435 = vpack.c.b16 %v1375, %v1369
  %v1436 = vpack.c.b16 %v1376, %v1370
  %v1437 = vpack.c.b16 %v1377, %v1371
  %v1438 = vpack.c.b16 %v1384, %v1378
  %v1439 = vpack.c.b16 %v1385, %v1379
  %v1440 = vpack.c.b16 %v1386, %v1380
  %v1441 = vpack.c.b16 %v1387, %v1381
  %v1442 = vpack.c.b16 %v1388, %v1382
  %v1443 = vpack.c.b16 %v1389, %v1383
  %v1444 = vpack.c.b16 %v1396, %v1390
  %v1445 = vpack.c.b16 %v1397, %v1391
  %v1446 = vpack.c.b16 %v1398, %v1392
  %v1447 = vpack.c.b16 %v1399, %v1393
  %v1448 = vpack.c.b16 %v1400, %v1394
  %v1449 = vpack.c.b16 %v1401, %v1395
  %1498 = vmatprep.subr.bf16.mxu0 %v1403
  %1499 = vmatpush1.bf16.msra.mxu0 %v1402
  %1500 = vmatprep.subr.bf16.mxu0 %v1409
  %1501 = vmatpush1.bf16.msra.mxu0 %v1408
  %1502 = vmatprep.subr.bf16.mxu0 %v1415
  %1503 = vmatpush1.bf16.msra.mxu0 %v1414
  %1504 = vmatprep.subr.bf16.mxu0 %v1421
  %1505 = vmatpush1.bf16.msra.mxu0 %v1420
  %1506 = vmatprep.subr.bf16.mxu0 %v1427
  %1507 = vmatpush1.bf16.msra.mxu0 %v1426
  %1508 = vmatprep.subr.bf16.mxu0 %v1433
  %1509 = vmatpush1.bf16.msra.mxu0 %v1432
  %1510 = vmatprep.subr.bf16.mxu0 %v1439
  %1511 = vmatpush1.bf16.msra.mxu0 %v1438
  %1512 = vmatprep.subr.bf16.mxu0 %v1445
  %1513 = vmatpush1.bf16.msra.mxu0 %v1444
  %1514 = vmatprep.subr.bf16.mxu0 0
  %1515 = vmatpush1.bf16.msra.mxu0 0
  %1516 = vmatprep.subr.bf16.mxu0 0
  %1517 = vmatpush1.bf16.msra.mxu0 0
  %1518 = vmatprep.subr.bf16.mxu0 0
  %1519 = vmatpush1.bf16.msra.mxu0 0
  %1520 = vmatprep.subr.bf16.mxu0 0
  %1521 = vmatpush1.bf16.msra.mxu0 0
  %1522 = vmatprep.subr.bf16.mxu0 0
  %1523 = vmatpush1.bf16.msra.mxu0 0
  %1524 = vmatprep.subr.bf16.mxu0 0
  %1525 = vmatpush1.bf16.msra.mxu0 0
  %1526 = vmatprep.subr.bf16.mxu0 0
  %1527 = vmatpush1.bf16.msra.mxu0 0
  %1528 = vmatprep.subr.bf16.mxu0 0
  %1529 = vmatpush1.bf16.msra.mxu0 0
  %1530 = vmatprep.mubr.bf16.mxu0 0
  %1531 = vmatmul.mubr.bf16.gmra.mrb[0].mxu0 %v1256
  %v1532 = vpop.f32.mrb[0].mxu0
  %v1533 = vadd.f32 %v1225, %v1532
  %v1534 = vpop.f32.mrb[0].mxu0
  %v1535 = vadd.f32 %v1229, %v1534
  %v1536 = vpop.f32.mrb[0].mxu0
  %v1537 = vadd.f32 %v1225, %v1536
  %v1538 = vpop.f32.mrb[0].mxu0
  %v1539 = vadd.f32 %v1229, %v1538
  %1540 = vdwg.mxu0
  %1541 = vmatprep.subr.bf16.mxu0 %v1405
  %1542 = vmatpush1.bf16.msra.mxu0 %v1404
  %1543 = vmatprep.subr.bf16.mxu0 %v1411
  %1544 = vmatpush1.bf16.msra.mxu0 %v1410
  %1545 = vmatprep.subr.bf16.mxu0 %v1417
  %1546 = vmatpush1.bf16.msra.mxu0 %v1416
  %1547 = vmatprep.subr.bf16.mxu0 %v1423
  %1548 = vmatpush1.bf16.msra.mxu0 %v1422
  %1549 = vmatprep.subr.bf16.mxu0 %v1429
  %1550 = vmatpush1.bf16.msra.mxu0 %v1428
  %1551 = vmatprep.subr.bf16.mxu0 %v1435
  %1552 = vmatpush1.bf16.msra.mxu0 %v1434
  %1553 = vmatprep.subr.bf16.mxu0 %v1441
  %1554 = vmatpush1.bf16.msra.mxu0 %v1440
  %1555 = vmatprep.subr.bf16.mxu0 %v1447
  %1556 = vmatpush1.bf16.msra.mxu0 %v1446
  %1557 = vmatprep.subr.bf16.mxu0 0
  %1558 = vmatpush1.bf16.msra.mxu0 0
  %1559 = vmatprep.subr.bf16.mxu0 0
  %1560 = vmatpush1.bf16.msra.mxu0 0
  %1561 = vmatprep.subr.bf16.mxu0 0
  %1562 = vmatpush1.bf16.msra.mxu0 0
  %1563 = vmatprep.subr.bf16.mxu0 0
  %1564 = vmatpush1.bf16.msra.mxu0 0
  %1565 = vmatprep.subr.bf16.mxu0 0
  %1566 = vmatpush1.bf16.msra.mxu0 0
  %1567 = vmatprep.subr.bf16.mxu0 0
  %1568 = vmatpush1.bf16.msra.mxu0 0
  %1569 = vmatprep.subr.bf16.mxu0 0
  %1570 = vmatpush1.bf16.msra.mxu0 0
  %1571 = vmatprep.subr.bf16.mxu0 0
  %1572 = vmatpush1.bf16.msra.mxu0 0
  %1573 = vmatprep.mubr.bf16.mxu0 0
  %1574 = vmatmul.mubr.bf16.gmra.mrb[0].mxu0 %v1256
  %v1575 = vpop.f32.mrb[0].mxu0
  %v1576 = vadd.f32 %v1233, %v1575
  %v1577 = vpop.f32.mrb[0].mxu0
  %v1578 = vadd.f32 %v1237, %v1577
  %v1579 = vpop.f32.mrb[0].mxu0
  %v1580 = vadd.f32 %v1233, %v1579
  %v1581 = vpop.f32.mrb[0].mxu0
  %v1582 = vadd.f32 %v1237, %v1581
  %1583 = vdwg.mxu0
  %1584 = vmatprep.subr.bf16.mxu0 %v1407
  %1585 = vmatpush1.bf16.msra.mxu0 %v1406
  %1586 = vmatprep.subr.bf16.mxu0 %v1413
  %1587 = vmatpush1.bf16.msra.mxu0 %v1412
  %1588 = vmatprep.subr.bf16.mxu0 %v1419
  %1589 = vmatpush1.bf16.msra.mxu0 %v1418
  %1590 = vmatprep.subr.bf16.mxu0 %v1425
  %1591 = vmatpush1.bf16.msra.mxu0 %v1424
  %1592 = vmatprep.subr.bf16.mxu0 %v1431
  %1593 = vmatpush1.bf16.msra.mxu0 %v1430
  %1594 = vmatprep.subr.bf16.mxu0 %v1437
  %1595 = vmatpush1.bf16.msra.mxu0 %v1436
  %1596 = vmatprep.subr.bf16.mxu0 %v1443
  %1597 = vmatpush1.bf16.msra.mxu0 %v1442
  %1598 = vmatprep.subr.bf16.mxu0 %v1449
  %1599 = vmatpush1.bf16.msra.mxu0 %v1448
  %1600 = vmatprep.subr.bf16.mxu0 0
  %1601 = vmatpush1.bf16.msra.mxu0 0
  %1602 = vmatprep.subr.bf16.mxu0 0
  %1603 = vmatpush1.bf16.msra.mxu0 0
  %1604 = vmatprep.subr.bf16.mxu0 0
  %1605 = vmatpush1.bf16.msra.mxu0 0
  %1606 = vmatprep.subr.bf16.mxu0 0
  %1607 = vmatpush1.bf16.msra.mxu0 0
  %1608 = vmatprep.subr.bf16.mxu0 0
  %1609 = vmatpush1.bf16.msra.mxu0 0
  %1610 = vmatprep.subr.bf16.mxu0 0
  %1611 = vmatpush1.bf16.msra.mxu0 0
  %1612 = vmatprep.subr.bf16.mxu0 0
  %1613 = vmatpush1.bf16.msra.mxu0 0
  %1614 = vmatprep.subr.bf16.mxu0 0
  %1615 = vmatpush1.bf16.msra.mxu0 0
  %1616 = vmatprep.mubr.bf16.mxu0 0
  %1617 = vmatmul.mubr.bf16.gmra.mrb[0].mxu0 %v1256
  %v1618 = vpop.f32.mrb[0].mxu0
  %v1619 = vadd.f32 %v1241, %v1618
  %v1620 = vpop.f32.mrb[0].mxu0
  %v1621 = vadd.f32 %v1245, %v1620
  %v1622 = vpop.f32.mrb[0].mxu0
  %v1623 = vadd.f32 %v1241, %v1622
  %v1624 = vpop.f32.mrb[0].mxu0
  %v1625 = vadd.f32 %v1245, %v1624
  %1626 = vdwg.mxu0
  %v1627 = vmax.f32 %v1533, 0.0
  %v1628 = vmax.f32 %v1535, 0.0
  %v1629 = vmax.f32 %v1576, 0.0
  %v1630 = vmax.f32 %v1578, 0.0
  %v1631 = vmax.f32 %v1619, 0.0
  %v1632 = vmax.f32 %v1621, 0.0
  %v1633 = vmax.f32 %v1537, 0.0
  %v1634 = vmax.f32 %v1539, 0.0
  %v1635 = vmax.f32 %v1580, 0.0
  %v1636 = vmax.f32 %v1582, 0.0
  %v1637 = vmax.f32 %v1623, 0.0
  %v1638 = vmax.f32 %v1625, 0.0
  %v1639 = vmax.f32 %v1627, %v1628
  %v1640 = vmax.f32 %v1633, %v1634
  %v1641 = vmax.f32 %v1639, %v1629
  %v1642 = vmax.f32 %v1640, %v1635
  %v1643 = vmax.f32 %v1641, %v1630
  %v1644 = vmax.f32 %v1642, %v1636
  %v1645 = vmax.f32 %v1643, %v1631
  %v1646 = vmax.f32 %v1644, %v1637
  %v1647 = vmax.f32 %v1645, %v1632
  %v1648 = vmax.f32 %v1646, %v1638
  %v1649 = vld [vmem:[%s2] sm:$0xff]
  %v1650 = vld [vmem:[%s2 + $0x8] sm:$0xf]
  %v1651 = vld [vmem:[%s2 + $0xc] sm:$0xff]
  %v1652 = vld [vmem:[%s2 + $0x14] sm:$0xf]
  %v1653 = vld [vmem:[%s11] sm:$0xff]
  %v1654 = vld [vmem:[%s11 + $0x8] sm:$0xff]
  %v1655 = vld [vmem:[%s11 + $0x10] sm:$0xff]
  %v1656 = vld [vmem:[%s11 + $0x18] sm:$0xff]
  %v1657 = vld [vmem:[%s11 + $0x20] sm:$0xff]
  %v1658 = vld [vmem:[%s11 + $0x28] sm:$0xff]
  %v1659 = vld [vmem:[%s11 + $0x30] sm:$0xff]
  %v1660 = vld [vmem:[%s11 + $0x38] sm:$0xff]
  %v1661 = vld [vmem:[%s11 + $0x40] sm:$0xff]
  %v1662 = vld [vmem:[%s11 + $0x48] sm:$0xff]
  %v1663 = vld [vmem:[%s11 + $0x50] sm:$0xff]
  %v1664 = vld [vmem:[%s11 + $0x58] sm:$0xff]
  %v1665 = vld [vmem:[%s11 + $0x60] sm:$0xff]
  %v1666 = vld [vmem:[%s11 + $0x68] sm:$0xff]
  %v1667 = vld [vmem:[%s11 + $0x70] sm:$0xff]
  %v1668 = vld [vmem:[%s11 + $0x78] sm:$0xff]
  %v1669 = vld [vmem:[%s11 + $0x80] sm:$0xff]
  %v1670 = vld [vmem:[%s11 + $0x88] sm:$0xff]
  %v1671 = vld [vmem:[%s11 + $0x90] sm:$0xff]
  %v1672 = vld [vmem:[%s11 + $0x98] sm:$0xff]
  %v1673 = vld [vmem:[%s11 + $0xa0] sm:$0xff]
  %v1674 = vld [vmem:[%s11 + $0xa8] sm:$0xff]
  %v1675 = vld [vmem:[%s11 + $0xb0] sm:$0xff]
  %v1676 = vld [vmem:[%s11 + $0xb8] sm:$0xff]
  %v1677 = vld [vmem:[%s11 + $0xc0] sm:$0xff]
  %v1678 = vld [vmem:[%s11 + $0xc8] sm:$0xff]
  %v1679 = vld [vmem:[%s11 + $0xd0] sm:$0xff]
  %v1680 = vld [vmem:[%s11 + $0xd8] sm:$0xff]
  %v1681 = vld [vmem:[%s11 + $0xe0] sm:$0xff]
  %v1682 = vld [vmem:[%s11 + $0xe8] sm:$0xff]
  %v1683 = vld [vmem:[%s11 + $0xf0] sm:$0xff]
  %v1684 = vld [vmem:[%s11 + $0xf8] sm:$0xff]
  %v1685 = vld [vmem:[%s11 + $0x100] sm:$0xff]
  %v1686 = vld [vmem:[%s11 + $0x108] sm:$0xff]
  %v1687 = vld [vmem:[%s11 + $0x110] sm:$0xff]
  %v1688 = vld [vmem:[%s11 + $0x118] sm:$0xff]
  %v1689 = vld [vmem:[%s11 + $0x120] sm:$0xff]
  %v1690 = vld [vmem:[%s11 + $0x128] sm:$0xff]
  %v1691 = vld [vmem:[%s11 + $0x130] sm:$0xff]
  %v1692 = vld [vmem:[%s11 + $0x138] sm:$0xff]
  %v1693 = vld [vmem:[%s11 + $0x140] sm:$0xff]
  %v1694 = vld [vmem:[%s11 + $0x148] sm:$0xff]
  %v1695 = vld [vmem:[%s11 + $0x150] sm:$0xff]
  %v1696 = vld [vmem:[%s11 + $0x158] sm:$0xff]
  %v1697 = vld [vmem:[%s11 + $0x160] sm:$0xff]
  %v1698 = vld [vmem:[%s11 + $0x168] sm:$0xff]
  %v1699 = vld [vmem:[%s11 + $0x170] sm:$0xff]
  %v1700 = vld [vmem:[%s11 + $0x178] sm:$0xff]
  %v1701 = vpack.c.bf16 %v1169, %v1168
  %v1702 = vld [vmem:[%s9] sm:$0xff]
  %v1703 = vld [vmem:[%s9 + $0x8] sm:$0xff]
  %v1704 = vld [vmem:[%s9 + $0x10] sm:$0xff]
  %v1705 = vld [vmem:[%s9 + $0x18] sm:$0xff]
  %v1706 = vld [vmem:[%s9 + $0x20] sm:$0xff]
  %v1707 = vld [vmem:[%s9 + $0x28] sm:$0xff]
  %v1708 = vld [vmem:[%s9 + $0x30] sm:$0xff]
  %v1709 = vld [vmem:[%s9 + $0x38] sm:$0xff]
  %v1718 = vunpack.c.l.b16 %v1702
  %v1719 = vunpack.c.h.b16 %v1702
  %v1720 = vunpack.c.l.b16 %v1703
  %v1721 = vunpack.c.h.b16 %v1703
  %v1722 = vunpack.c.l.b16 %v1704
  %v1723 = vunpack.c.h.b16 %v1704
  %v1724 = vunpack.c.l.b16 %v1705
  %v1725 = vunpack.c.h.b16 %v1705
  %v1726 = vunpack.c.l.b16 %v1706
  %v1727 = vunpack.c.h.b16 %v1706
  %v1728 = vunpack.c.l.b16 %v1707
  %v1729 = vunpack.c.h.b16 %v1707
  %v1730 = vunpack.c.l.b16 %v1708
  %v1731 = vunpack.c.h.b16 %v1708
  %v1732 = vunpack.c.l.b16 %v1709
  %v1733 = vunpack.c.h.b16 %v1709
  %v1734 = vpack.c.b16 %v1720, %v1718
  %v1735 = vpack.c.b16 %v1721, %v1719
  %v1736 = vpack.c.b16 %v1724, %v1722
  %v1737 = vpack.c.b16 %v1725, %v1723
  %v1738 = vpack.c.b16 %v1728, %v1726
  %v1739 = vpack.c.b16 %v1729, %v1727
  %v1740 = vpack.c.b16 %v1732, %v1730
  %v1741 = vpack.c.b16 %v1733, %v1731
  %v1751 = vsel %vm304, %v1701, 0
  %1753 = vmatprep.subr.bf16.mxu0 %v1735
  %1754 = vmatpush1.bf16.msra.mxu0 %v1734
  %1755 = vmatprep.subr.bf16.mxu0 %v1737
  %1756 = vmatpush1.bf16.msra.mxu0 %v1736
  %1757 = vmatprep.subr.bf16.mxu0 %v1739
  %1758 = vmatpush1.bf16.msra.mxu0 %v1738
  %1759 = vmatprep.subr.bf16.mxu0 %v1741
  %1760 = vmatpush1.bf16.msra.mxu0 %v1740
  %1761 = vmatprep.subr.bf16.mxu0 0
  %1762 = vmatpush1.bf16.msra.mxu0 0
  %1763 = vmatprep.subr.bf16.mxu0 0
  %1764 = vmatpush1.bf16.msra.mxu0 0
  %1765 = vmatprep.subr.bf16.mxu0 0
  %1766 = vmatpush1.bf16.msra.mxu0 0
  %1767 = vmatprep.subr.bf16.mxu0 0
  %1768 = vmatpush1.bf16.msra.mxu0 0
  %1769 = vmatprep.subr.bf16.mxu0 0
  %1770 = vmatpush1.bf16.msra.mxu0 0
  %1771 = vmatprep.subr.bf16.mxu0 0
  %1772 = vmatpush1.bf16.msra.mxu0 0
  %1773 = vmatprep.subr.bf16.mxu0 0
  %1774 = vmatpush1.bf16.msra.mxu0 0
  %1775 = vmatprep.subr.bf16.mxu0 0
  %1776 = vmatpush1.bf16.msra.mxu0 0
  %1777 = vmatprep.subr.bf16.mxu0 0
  %1778 = vmatpush1.bf16.msra.mxu0 0
  %1779 = vmatprep.subr.bf16.mxu0 0
  %1780 = vmatpush1.bf16.msra.mxu0 0
  %1781 = vmatprep.subr.bf16.mxu0 0
  %1782 = vmatpush1.bf16.msra.mxu0 0
  %1783 = vmatprep.subr.bf16.mxu0 0
  %1784 = vmatpush1.bf16.msra.mxu0 0
  %1785 = vmatprep.mubr.bf16.mxu0 0
  %1786 = vmatmul.mubr.bf16.gmra.mrb[0].mxu0 %v1751
  %v1787 = vpop.f32.mrb[0].mxu0
  %v1788 = vadd.f32 0.0, %v1787
  %v1789 = vpop.f32.mrb[0].mxu0
  %v1790 = vadd.f32 0.0, %v1789
  %v1791 = vpop.f32.mrb[0].mxu0
  %v1792 = vadd.f32 0.0, %v1791
  %v1793 = vpop.f32.mrb[0].mxu0
  %v1794 = vadd.f32 0.0, %v1793
  %1795 = vdwg.mxu0
  %v1800 = vunpack.c.l.b16 %v1649
  %v1801 = vunpack.c.h.b16 %v1649
  %v1802 = vunpack.c.l.b16 %v1650
  %v1803 = vunpack.c.l.b16 %v1651
  %v1804 = vunpack.c.h.b16 %v1651
  %v1805 = vunpack.c.l.b16 %v1652
  %v1806 = vpack.c.b16 %v1803, %v1800
  %v1807 = vpack.c.b16 %v1804, %v1801
  %v1808 = vpack.c.b16 %v1805, %v1802
  %v1860 = vunpack.c.l.b16 %v1653
  %v1861 = vunpack.c.h.b16 %v1653
  %v1862 = vunpack.c.l.b16 %v1654
  %v1863 = vunpack.c.h.b16 %v1654
  %v1864 = vunpack.c.l.b16 %v1655
  %v1865 = vunpack.c.h.b16 %v1655
  %v1866 = vunpack.c.l.b16 %v1656
  %v1867 = vunpack.c.h.b16 %v1656
  %v1868 = vunpack.c.l.b16 %v1657
  %v1869 = vunpack.c.h.b16 %v1657
  %v1870 = vunpack.c.l.b16 %v1658
  %v1871 = vunpack.c.h.b16 %v1658
  %v1872 = vunpack.c.l.b16 %v1659
  %v1873 = vunpack.c.h.b16 %v1659
  %v1874 = vunpack.c.l.b16 %v1660
  %v1875 = vunpack.c.h.b16 %v1660
  %v1876 = vunpack.c.l.b16 %v1661
  %v1877 = vunpack.c.h.b16 %v1661
  %v1878 = vunpack.c.l.b16 %v1662
  %v1879 = vunpack.c.h.b16 %v1662
  %v1880 = vunpack.c.l.b16 %v1663
  %v1881 = vunpack.c.h.b16 %v1663
  %v1882 = vunpack.c.l.b16 %v1664
  %v1883 = vunpack.c.h.b16 %v1664
  %v1884 = vunpack.c.l.b16 %v1665
  %v1885 = vunpack.c.h.b16 %v1665
  %v1886 = vunpack.c.l.b16 %v1666
  %v1887 = vunpack.c.h.b16 %v1666
  %v1888 = vunpack.c.l.b16 %v1667
  %v1889 = vunpack.c.h.b16 %v1667
  %v1890 = vunpack.c.l.b16 %v1668
  %v1891 = vunpack.c.h.b16 %v1668
  %v1892 = vunpack.c.l.b16 %v1669
  %v1893 = vunpack.c.h.b16 %v1669
  %v1894 = vunpack.c.l.b16 %v1670
  %v1895 = vunpack.c.h.b16 %v1670
  %v1896 = vunpack.c.l.b16 %v1671
  %v1897 = vunpack.c.h.b16 %v1671
  %v1898 = vunpack.c.l.b16 %v1672
  %v1899 = vunpack.c.h.b16 %v1672
  %v1900 = vunpack.c.l.b16 %v1673
  %v1901 = vunpack.c.h.b16 %v1673
  %v1902 = vunpack.c.l.b16 %v1674
  %v1903 = vunpack.c.h.b16 %v1674
  %v1904 = vunpack.c.l.b16 %v1675
  %v1905 = vunpack.c.h.b16 %v1675
  %v1906 = vunpack.c.l.b16 %v1676
  %v1907 = vunpack.c.h.b16 %v1676
  %v1908 = vunpack.c.l.b16 %v1677
  %v1909 = vunpack.c.h.b16 %v1677
  %v1910 = vunpack.c.l.b16 %v1678
  %v1911 = vunpack.c.h.b16 %v1678
  %v1912 = vunpack.c.l.b16 %v1679
  %v1913 = vunpack.c.h.b16 %v1679
  %v1914 = vunpack.c.l.b16 %v1680
  %v1915 = vunpack.c.h.b16 %v1680
  %v1916 = vunpack.c.l.b16 %v1681
  %v1917 = vunpack.c.h.b16 %v1681
  %v1918 = vunpack.c.l.b16 %v1682
  %v1919 = vunpack.c.h.b16 %v1682
  %v1920 = vunpack.c.l.b16 %v1683
  %v1921 = vunpack.c.h.b16 %v1683
  %v1922 = vunpack.c.l.b16 %v1684
  %v1923 = vunpack.c.h.b16 %v1684
  %v1924 = vunpack.c.l.b16 %v1685
  %v1925 = vunpack.c.h.b16 %v1685
  %v1926 = vunpack.c.l.b16 %v1686
  %v1927 = vunpack.c.h.b16 %v1686
  %v1928 = vunpack.c.l.b16 %v1687
  %v1929 = vunpack.c.h.b16 %v1687
  %v1930 = vunpack.c.l.b16 %v1688
  %v1931 = vunpack.c.h.b16 %v1688
  %v1932 = vunpack.c.l.b16 %v1689
  %v1933 = vunpack.c.h.b16 %v1689
  %v1934 = vunpack.c.l.b16 %v1690
  %v1935 = vunpack.c.h.b16 %v1690
  %v1936 = vunpack.c.l.b16 %v1691
  %v1937 = vunpack.c.h.b16 %v1691
  %v1938 = vunpack.c.l.b16 %v1692
  %v1939 = vunpack.c.h.b16 %v1692
  %v1940 = vunpack.c.l.b16 %v1693
  %v1941 = vunpack.c.h.b16 %v1693
  %v1942 = vunpack.c.l.b16 %v1694
  %v1943 = vunpack.c.h.b16 %v1694
  %v1944 = vunpack.c.l.b16 %v1695
  %v1945 = vunpack.c.h.b16 %v1695
  %v1946 = vunpack.c.l.b16 %v1696
  %v1947 = vunpack.c.h.b16 %v1696
  %v1948 = vunpack.c.l.b16 %v1697
  %v1949 = vunpack.c.h.b16 %v1697
  %v1950 = vunpack.c.l.b16 %v1698
  %v1951 = vunpack.c.h.b16 %v1698
  %v1952 = vunpack.c.l.b16 %v1699
  %v1953 = vunpack.c.h.b16 %v1699
  %v1954 = vunpack.c.l.b16 %v1700
  %v1955 = vunpack.c.h.b16 %v1700
  %v1956 = vpack.c.b16 %v1862, %v1860
  %v1957 = vpack.c.b16 %v1863, %v1861
  %v1958 = vpack.c.b16 %v1866, %v1864
  %v1959 = vpack.c.b16 %v1867, %v1865
  %v1960 = vpack.c.b16 %v1870, %v1868
  %v1961 = vpack.c.b16 %v1871, %v1869
  %v1962 = vpack.c.b16 %v1874, %v1872
  %v1963 = vpack.c.b16 %v1875, %v1873
  %v1964 = vpack.c.b16 %v1878, %v1876
  %v1965 = vpack.c.b16 %v1879, %v1877
  %v1966 = vpack.c.b16 %v1882, %v1880
  %v1967 = vpack.c.b16 %v1883, %v1881
  %v1968 = vpack.c.b16 %v1886, %v1884
  %v1969 = vpack.c.b16 %v1887, %v1885
  %v1970 = vpack.c.b16 %v1890, %v1888
  %v1971 = vpack.c.b16 %v1891, %v1889
  %v1972 = vpack.c.b16 %v1894, %v1892
  %v1973 = vpack.c.b16 %v1895, %v1893
  %v1974 = vpack.c.b16 %v1898, %v1896
  %v1975 = vpack.c.b16 %v1899, %v1897
  %v1976 = vpack.c.b16 %v1902, %v1900
  %v1977 = vpack.c.b16 %v1903, %v1901
  %v1978 = vpack.c.b16 %v1906, %v1904
  %v1979 = vpack.c.b16 %v1907, %v1905
  %v1980 = vpack.c.b16 %v1910, %v1908
  %v1981 = vpack.c.b16 %v1911, %v1909
  %v1982 = vpack.c.b16 %v1914, %v1912
  %v1983 = vpack.c.b16 %v1915, %v1913
  %v1984 = vpack.c.b16 %v1918, %v1916
  %v1985 = vpack.c.b16 %v1919, %v1917
  %v1986 = vpack.c.b16 %v1922, %v1920
  %v1987 = vpack.c.b16 %v1923, %v1921
  %v1988 = vpack.c.b16 %v1926, %v1924
  %v1989 = vpack.c.b16 %v1927, %v1925
  %v1990 = vpack.c.b16 %v1930, %v1928
  %v1991 = vpack.c.b16 %v1931, %v1929
  %v1992 = vpack.c.b16 %v1934, %v1932
  %v1993 = vpack.c.b16 %v1935, %v1933
  %v1994 = vpack.c.b16 %v1938, %v1936
  %v1995 = vpack.c.b16 %v1939, %v1937
  %v1996 = vpack.c.b16 %v1942, %v1940
  %v1997 = vpack.c.b16 %v1943, %v1941
  %v1998 = vpack.c.b16 %v1946, %v1944
  %v1999 = vpack.c.b16 %v1947, %v1945
  %v2000 = vpack.c.b16 %v1950, %v1948
  %v2001 = vpack.c.b16 %v1951, %v1949
  %v2002 = vpack.c.b16 %v1954, %v1952
  %v2003 = vpack.c.b16 %v1955, %v1953
  %2052 = vmatprep.subr.bf16.mxu0 %v1957
  %2053 = vmatpush1.bf16.msra.mxu0 %v1956
  %2054 = vmatprep.subr.bf16.mxu0 %v1959
  %2055 = vmatpush1.bf16.msra.mxu0 %v1958
  %2056 = vmatprep.subr.bf16.mxu0 %v1961
  %2057 = vmatpush1.bf16.msra.mxu0 %v1960
  %2058 = vmatprep.subr.bf16.mxu0 %v1963
  %2059 = vmatpush1.bf16.msra.mxu0 %v1962
  %2060 = vmatprep.subr.bf16.mxu0 %v1965
  %2061 = vmatpush1.bf16.msra.mxu0 %v1964
  %2062 = vmatprep.subr.bf16.mxu0 %v1967
  %2063 = vmatpush1.bf16.msra.mxu0 %v1966
  %2064 = vmatprep.subr.bf16.mxu0 %v1969
  %2065 = vmatpush1.bf16.msra.mxu0 %v1968
  %2066 = vmatprep.subr.bf16.mxu0 %v1971
  %2067 = vmatpush1.bf16.msra.mxu0 %v1970
  %2068 = vmatprep.subr.bf16.mxu0 %v1973
  %2069 = vmatpush1.bf16.msra.mxu0 %v1972
  %2070 = vmatprep.subr.bf16.mxu0 %v1975
  %2071 = vmatpush1.bf16.msra.mxu0 %v1974
  %2072 = vmatprep.subr.bf16.mxu0 %v1977
  %2073 = vmatpush1.bf16.msra.mxu0 %v1976
  %2074 = vmatprep.subr.bf16.mxu0 %v1979
  %2075 = vmatpush1.bf16.msra.mxu0 %v1978
  %2076 = vmatprep.subr.bf16.mxu0 %v1981
  %2077 = vmatpush1.bf16.msra.mxu0 %v1980
  %2078 = vmatprep.subr.bf16.mxu0 %v1983
  %2079 = vmatpush1.bf16.msra.mxu0 %v1982
  %2080 = vmatprep.subr.bf16.mxu0 %v1985
  %2081 = vmatpush1.bf16.msra.mxu0 %v1984
  %2082 = vmatprep.subr.bf16.mxu0 %v1987
  %2083 = vmatpush1.bf16.msra.mxu0 %v1986
  %2084 = vmatprep.mubr.bf16.mxu0 %v1807
  %2085 = vmatmul.mubr.bf16.gmra.mrb[0].mxu0 %v1806
  %v2086 = vpop.f32.mrb[0].mxu0
  %v2087 = vadd.f32 %v1788, %v2086
  %v2088 = vpop.f32.mrb[0].mxu0
  %v2089 = vadd.f32 %v1790, %v2088
  %v2090 = vpop.f32.mrb[0].mxu0
  %v2091 = vadd.f32 %v1792, %v2090
  %v2092 = vpop.f32.mrb[0].mxu0
  %v2093 = vadd.f32 %v1794, %v2092
  %2094 = vdwg.mxu0
  %2095 = vmatprep.subr.bf16.mxu0 %v1989
  %2096 = vmatpush1.bf16.msra.mxu0 %v1988
  %2097 = vmatprep.subr.bf16.mxu0 %v1991
  %2098 = vmatpush1.bf16.msra.mxu0 %v1990
  %2099 = vmatprep.subr.bf16.mxu0 %v1993
  %2100 = vmatpush1.bf16.msra.mxu0 %v1992
  %2101 = vmatprep.subr.bf16.mxu0 %v1995
  %2102 = vmatpush1.bf16.msra.mxu0 %v1994
  %2103 = vmatprep.subr.bf16.mxu0 %v1997
  %2104 = vmatpush1.bf16.msra.mxu0 %v1996
  %2105 = vmatprep.subr.bf16.mxu0 %v1999
  %2106 = vmatpush1.bf16.msra.mxu0 %v1998
  %2107 = vmatprep.subr.bf16.mxu0 %v2001
  %2108 = vmatpush1.bf16.msra.mxu0 %v2000
  %2109 = vmatprep.subr.bf16.mxu0 %v2003
  %2110 = vmatpush1.bf16.msra.mxu0 %v2002
  %2111 = vmatprep.subr.bf16.mxu0 0
  %2112 = vmatpush1.bf16.msra.mxu0 0
  %2113 = vmatprep.subr.bf16.mxu0 0
  %2114 = vmatpush1.bf16.msra.mxu0 0
  %2115 = vmatprep.subr.bf16.mxu0 0
  %2116 = vmatpush1.bf16.msra.mxu0 0
  %2117 = vmatprep.subr.bf16.mxu0 0
  %2118 = vmatpush1.bf16.msra.mxu0 0
  %2119 = vmatprep.subr.bf16.mxu0 0
  %2120 = vmatpush1.bf16.msra.mxu0 0
  %2121 = vmatprep.subr.bf16.mxu0 0
  %2122 = vmatpush1.bf16.msra.mxu0 0
  %2123 = vmatprep.subr.bf16.mxu0 0
  %2124 = vmatpush1.bf16.msra.mxu0 0
  %2125 = vmatprep.subr.bf16.mxu0 0
  %2126 = vmatpush1.bf16.msra.mxu0 0
  %2127 = vmatprep.mubr.bf16.mxu0 0
  %2128 = vmatmul.mubr.bf16.gmra.mrb[0].mxu0 %v1808
  %v2129 = vpop.f32.mrb[0].mxu0
  %v2130 = vadd.f32 %v2087, %v2129
  %v2131 = vpop.f32.mrb[0].mxu0
  %v2132 = vadd.f32 %v2089, %v2131
  %v2133 = vpop.f32.mrb[0].mxu0
  %v2134 = vadd.f32 %v2091, %v2133
  %v2135 = vpop.f32.mrb[0].mxu0
  %v2136 = vadd.f32 %v2093, %v2135
  %2137 = vdwg.mxu0
  %v2138 = vpack.c.bf16 %v1648, %v1647
  %v2139 = vld [vmem:[%s10] sm:$0xff]
  %v2140 = vld [vmem:[%s10 + $0x8] sm:$0xff]
  %v2141 = vld [vmem:[%s10 + $0x10] sm:$0xff]
  %v2142 = vld [vmem:[%s10 + $0x18] sm:$0xff]
  %v2143 = vld [vmem:[%s10 + $0x20] sm:$0xff]
  %v2144 = vld [vmem:[%s10 + $0x28] sm:$0xff]
  %v2145 = vld [vmem:[%s10 + $0x30] sm:$0xff]
  %v2146 = vld [vmem:[%s10 + $0x38] sm:$0xff]
  %v2147 = vld [vmem:[%s10 + $0x40] sm:$0xff]
  %v2148 = vld [vmem:[%s10 + $0x48] sm:$0xff]
  %v2149 = vld [vmem:[%s10 + $0x50] sm:$0xff]
  %v2150 = vld [vmem:[%s10 + $0x58] sm:$0xff]
  %v2151 = vld [vmem:[%s10 + $0x60] sm:$0xff]
  %v2152 = vld [vmem:[%s10 + $0x68] sm:$0xff]
  %v2153 = vld [vmem:[%s10 + $0x70] sm:$0xff]
  %v2154 = vld [vmem:[%s10 + $0x78] sm:$0xff]
  %v2171 = vunpack.c.l.b16 %v2139
  %v2172 = vunpack.c.h.b16 %v2139
  %v2173 = vunpack.c.l.b16 %v2140
  %v2174 = vunpack.c.h.b16 %v2140
  %v2175 = vunpack.c.l.b16 %v2141
  %v2176 = vunpack.c.h.b16 %v2141
  %v2177 = vunpack.c.l.b16 %v2142
  %v2178 = vunpack.c.h.b16 %v2142
  %v2179 = vunpack.c.l.b16 %v2143
  %v2180 = vunpack.c.h.b16 %v2143
  %v2181 = vunpack.c.l.b16 %v2144
  %v2182 = vunpack.c.h.b16 %v2144
  %v2183 = vunpack.c.l.b16 %v2145
  %v2184 = vunpack.c.h.b16 %v2145
  %v2185 = vunpack.c.l.b16 %v2146
  %v2186 = vunpack.c.h.b16 %v2146
  %v2187 = vunpack.c.l.b16 %v2147
  %v2188 = vunpack.c.h.b16 %v2147
  %v2189 = vunpack.c.l.b16 %v2148
  %v2190 = vunpack.c.h.b16 %v2148
  %v2191 = vunpack.c.l.b16 %v2149
  %v2192 = vunpack.c.h.b16 %v2149
  %v2193 = vunpack.c.l.b16 %v2150
  %v2194 = vunpack.c.h.b16 %v2150
  %v2195 = vunpack.c.l.b16 %v2151
  %v2196 = vunpack.c.h.b16 %v2151
  %v2197 = vunpack.c.l.b16 %v2152
  %v2198 = vunpack.c.h.b16 %v2152
  %v2199 = vunpack.c.l.b16 %v2153
  %v2200 = vunpack.c.h.b16 %v2153
  %v2201 = vunpack.c.l.b16 %v2154
  %v2202 = vunpack.c.h.b16 %v2154
  %v2203 = vpack.c.b16 %v2173, %v2171
  %v2204 = vpack.c.b16 %v2174, %v2172
  %v2205 = vpack.c.b16 %v2177, %v2175
  %v2206 = vpack.c.b16 %v2178, %v2176
  %v2207 = vpack.c.b16 %v2181, %v2179
  %v2208 = vpack.c.b16 %v2182, %v2180
  %v2209 = vpack.c.b16 %v2185, %v2183
  %v2210 = vpack.c.b16 %v2186, %v2184
  %v2211 = vpack.c.b16 %v2189, %v2187
  %v2212 = vpack.c.b16 %v2190, %v2188
  %v2213 = vpack.c.b16 %v2193, %v2191
  %v2214 = vpack.c.b16 %v2194, %v2192
  %v2215 = vpack.c.b16 %v2197, %v2195
  %v2216 = vpack.c.b16 %v2198, %v2196
  %v2217 = vpack.c.b16 %v2201, %v2199
  %v2218 = vpack.c.b16 %v2202, %v2200
  %2235 = vmatprep.subr.bf16.mxu0 %v2204
  %2236 = vmatpush1.bf16.msra.mxu0 %v2203
  %2237 = vmatprep.subr.bf16.mxu0 %v2206
  %2238 = vmatpush1.bf16.msra.mxu0 %v2205
  %2239 = vmatprep.subr.bf16.mxu0 %v2208
  %2240 = vmatpush1.bf16.msra.mxu0 %v2207
  %2241 = vmatprep.subr.bf16.mxu0 %v2210
  %2242 = vmatpush1.bf16.msra.mxu0 %v2209
  %2243 = vmatprep.subr.bf16.mxu0 %v2212
  %2244 = vmatpush1.bf16.msra.mxu0 %v2211
  %2245 = vmatprep.subr.bf16.mxu0 %v2214
  %2246 = vmatpush1.bf16.msra.mxu0 %v2213
  %2247 = vmatprep.subr.bf16.mxu0 %v2216
  %2248 = vmatpush1.bf16.msra.mxu0 %v2215
  %2249 = vmatprep.subr.bf16.mxu0 %v2218
  %2250 = vmatpush1.bf16.msra.mxu0 %v2217
  %2251 = vmatprep.subr.bf16.mxu0 0
  %2252 = vmatpush1.bf16.msra.mxu0 0
  %2253 = vmatprep.subr.bf16.mxu0 0
  %2254 = vmatpush1.bf16.msra.mxu0 0
  %2255 = vmatprep.subr.bf16.mxu0 0
  %2256 = vmatpush1.bf16.msra.mxu0 0
  %2257 = vmatprep.subr.bf16.mxu0 0
  %2258 = vmatpush1.bf16.msra.mxu0 0
  %2259 = vmatprep.subr.bf16.mxu0 0
  %2260 = vmatpush1.bf16.msra.mxu0 0
  %2261 = vmatprep.subr.bf16.mxu0 0
  %2262 = vmatpush1.bf16.msra.mxu0 0
  %2263 = vmatprep.subr.bf16.mxu0 0
  %2264 = vmatpush1.bf16.msra.mxu0 0
  %2265 = vmatprep.subr.bf16.mxu0 0
  %2266 = vmatpush1.bf16.msra.mxu0 0
  %2267 = vmatprep.mubr.bf16.mxu0 0
  %2268 = vmatmul.mubr.bf16.gmra.mrb[0].mxu0 %v2138
  %v2269 = vpop.f32.mrb[0].mxu0
  %v2270 = vadd.f32 0.0, %v2269
  %v2271 = vpop.f32.mrb[0].mxu0
  %v2272 = vadd.f32 0.0, %v2271
  %v2273 = vpop.f32.mrb[0].mxu0
  %v2274 = vadd.f32 0.0, %v2273
  %v2275 = vpop.f32.mrb[0].mxu0
  %v2276 = vadd.f32 0.0, %v2275
  %2277 = vdwg.mxu0
  %v2278 = vadd.f32 %v2130, %v2270
  %v2279 = vadd.f32 %v2132, %v2272
  %v2280 = vadd.f32 %v2134, %v2274
  %v2281 = vadd.f32 %v2136, %v2276
  %v2282 = vld [vmem:[%s12] sm:$0x3]
  %v2284 = vlaneseq
  %v2285 = vshrl.u32 %v2284, 7
  %v2286 = vsub.s32 0, %v2285
  %v2287 = vrot.slane %v2282, %v2286
  %v2288 = vlaneseq
  %v2289 = vshrl.u32 %v2288, 7
  %v2290 = vsub.s32 1, %v2289
  %v2291 = vrot.slane %v2282, %v2290
  %v2294 = vadd.f32 %v2278, %v2287
  %v2295 = vadd.f32 %v2279, %v2291
  %v2296 = vadd.f32 %v2280, %v2287
  %v2297 = vadd.f32 %v2281, %v2291
  %v2298 = vmax.f32 %v2294, 0.0
  %v2299 = vmax.f32 %v2295, 0.0
  %v2300 = vmax.f32 %v2296, 0.0
  %v2301 = vmax.f32 %v2297, 0.0
  %v2302 = vpack.c.bf16 %v2300, %v2298
  %v2303 = vpack.c.bf16 %v2301, %v2299
  %v2304 = vld [vmem:[%s13] sm:$0xf]
  %v2305 = vld [vmem:[%s13 + $0x4] sm:$0xf]
  %v2306 = vld [vmem:[%s13 + $0x8] sm:$0xf]
  %v2307 = vld [vmem:[%s13 + $0xc] sm:$0xf]
  %v2308 = vld [vmem:[%s13 + $0x10] sm:$0xf]
  %v2309 = vld [vmem:[%s13 + $0x14] sm:$0xf]
  %v2310 = vld [vmem:[%s13 + $0x18] sm:$0xf]
  %v2311 = vld [vmem:[%s13 + $0x1c] sm:$0xf]
  %v2312 = vld [vmem:[%s13 + $0x20] sm:$0xf]
  %v2313 = vld [vmem:[%s13 + $0x24] sm:$0xf]
  %v2314 = vld [vmem:[%s13 + $0x28] sm:$0xf]
  %v2315 = vld [vmem:[%s13 + $0x2c] sm:$0xf]
  %v2316 = vld [vmem:[%s13 + $0x30] sm:$0xf]
  %v2317 = vld [vmem:[%s13 + $0x34] sm:$0xf]
  %v2318 = vld [vmem:[%s13 + $0x38] sm:$0xf]
  %v2319 = vld [vmem:[%s13 + $0x3c] sm:$0xf]
  %v2320 = vld [vmem:[%s13 + $0x40] sm:$0xf]
  %v2321 = vld [vmem:[%s13 + $0x44] sm:$0xf]
  %v2322 = vld [vmem:[%s13 + $0x48] sm:$0xf]
  %v2323 = vld [vmem:[%s13 + $0x4c] sm:$0xf]
  %v2324 = vld [vmem:[%s13 + $0x50] sm:$0xf]
  %v2325 = vld [vmem:[%s13 + $0x54] sm:$0xf]
  %v2326 = vld [vmem:[%s13 + $0x58] sm:$0xf]
  %v2327 = vld [vmem:[%s13 + $0x5c] sm:$0xf]
  %v2328 = vld [vmem:[%s13 + $0x60] sm:$0xf]
  %v2329 = vld [vmem:[%s13 + $0x64] sm:$0xf]
  %v2330 = vld [vmem:[%s13 + $0x68] sm:$0xf]
  %v2331 = vld [vmem:[%s13 + $0x6c] sm:$0xf]
  %v2332 = vld [vmem:[%s13 + $0x70] sm:$0xf]
  %v2333 = vld [vmem:[%s13 + $0x74] sm:$0xf]
  %v2334 = vld [vmem:[%s13 + $0x78] sm:$0xf]
  %v2335 = vld [vmem:[%s13 + $0x7c] sm:$0xf]
  %v2336 = vld [vmem:[%s14] sm:$0x1]
  %v2338 = vlaneseq
  %v2339 = vshrl.u32 %v2338, 7
  %v2340 = vsub.s32 0, %v2339
  %v2341 = vrot.slane %v2336, %v2340
  %v2375 = vunpack.c.l.b16 %v2304
  %v2376 = vunpack.c.l.b16 %v2305
  %v2377 = vunpack.c.l.b16 %v2306
  %v2378 = vunpack.c.l.b16 %v2307
  %v2379 = vunpack.c.l.b16 %v2308
  %v2380 = vunpack.c.l.b16 %v2309
  %v2381 = vunpack.c.l.b16 %v2310
  %v2382 = vunpack.c.l.b16 %v2311
  %v2383 = vunpack.c.l.b16 %v2312
  %v2384 = vunpack.c.l.b16 %v2313
  %v2385 = vunpack.c.l.b16 %v2314
  %v2386 = vunpack.c.l.b16 %v2315
  %v2387 = vunpack.c.l.b16 %v2316
  %v2388 = vunpack.c.l.b16 %v2317
  %v2389 = vunpack.c.l.b16 %v2318
  %v2390 = vunpack.c.l.b16 %v2319
  %v2391 = vunpack.c.l.b16 %v2320
  %v2392 = vunpack.c.l.b16 %v2321
  %v2393 = vunpack.c.l.b16 %v2322
  %v2394 = vunpack.c.l.b16 %v2323
  %v2395 = vunpack.c.l.b16 %v2324
  %v2396 = vunpack.c.l.b16 %v2325
  %v2397 = vunpack.c.l.b16 %v2326
  %v2398 = vunpack.c.l.b16 %v2327
  %v2399 = vunpack.c.l.b16 %v2328
  %v2400 = vunpack.c.l.b16 %v2329
  %v2401 = vunpack.c.l.b16 %v2330
  %v2402 = vunpack.c.l.b16 %v2331
  %v2403 = vunpack.c.l.b16 %v2332
  %v2404 = vunpack.c.l.b16 %v2333
  %v2405 = vunpack.c.l.b16 %v2334
  %v2406 = vunpack.c.l.b16 %v2335
  %v2407 = vpack.c.b16 %v2376, %v2375
  %v2408 = vpack.c.b16 %v2378, %v2377
  %v2409 = vpack.c.b16 %v2380, %v2379
  %v2410 = vpack.c.b16 %v2382, %v2381
  %v2411 = vpack.c.b16 %v2384, %v2383
  %v2412 = vpack.c.b16 %v2386, %v2385
  %v2413 = vpack.c.b16 %v2388, %v2387
  %v2414 = vpack.c.b16 %v2390, %v2389
  %v2415 = vpack.c.b16 %v2392, %v2391
  %v2416 = vpack.c.b16 %v2394, %v2393
  %v2417 = vpack.c.b16 %v2396, %v2395
  %v2418 = vpack.c.b16 %v2398, %v2397
  %v2419 = vpack.c.b16 %v2400, %v2399
  %v2420 = vpack.c.b16 %v2402, %v2401
  %v2421 = vpack.c.b16 %v2404, %v2403
  %v2422 = vpack.c.b16 %v2406, %v2405
  %2439 = vmatprep.subr.bf16.mxu0 0
  %2440 = vmatpush1.bf16.msra.mxu0 %v2407
  %2441 = vmatprep.subr.bf16.mxu0 0
  %2442 = vmatpush1.bf16.msra.mxu0 %v2408
  %2443 = vmatprep.subr.bf16.mxu0 0
  %2444 = vmatpush1.bf16.msra.mxu0 %v2409
  %2445 = vmatprep.subr.bf16.mxu0 0
  %2446 = vmatpush1.bf16.msra.mxu0 %v2410
  %2447 = vmatprep.subr.bf16.mxu0 0
  %2448 = vmatpush1.bf16.msra.mxu0 %v2411
  %2449 = vmatprep.subr.bf16.mxu0 0
  %2450 = vmatpush1.bf16.msra.mxu0 %v2412
  %2451 = vmatprep.subr.bf16.mxu0 0
  %2452 = vmatpush1.bf16.msra.mxu0 %v2413
  %2453 = vmatprep.subr.bf16.mxu0 0
  %2454 = vmatpush1.bf16.msra.mxu0 %v2414
  %2455 = vmatprep.subr.bf16.mxu0 0
  %2456 = vmatpush1.bf16.msra.mxu0 %v2415
  %2457 = vmatprep.subr.bf16.mxu0 0
  %2458 = vmatpush1.bf16.msra.mxu0 %v2416
  %2459 = vmatprep.subr.bf16.mxu0 0
  %2460 = vmatpush1.bf16.msra.mxu0 %v2417
  %2461 = vmatprep.subr.bf16.mxu0 0
  %2462 = vmatpush1.bf16.msra.mxu0 %v2418
  %2463 = vmatprep.subr.bf16.mxu0 0
  %2464 = vmatpush1.bf16.msra.mxu0 %v2419
  %2465 = vmatprep.subr.bf16.mxu0 0
  %2466 = vmatpush1.bf16.msra.mxu0 %v2420
  %2467 = vmatprep.subr.bf16.mxu0 0
  %2468 = vmatpush1.bf16.msra.mxu0 %v2421
  %2469 = vmatprep.subr.bf16.mxu0 0
  %2470 = vmatpush1.bf16.msra.mxu0 %v2422
  %2471 = vmatprep.mubr.bf16.mxu0 %v2303
  %2472 = vmatmul.mubr.bf16.gmra.mrb[0].mxu0 %v2302
  %v2473 = vpop.f32.mrb[0].mxu0
  %v2474 = vadd.f32 %v2341, %v2473
  %v2475 = vpop.f32.mrb[0].mxu0
  %v2476 = vpop.f32.mrb[0].mxu0
  %v2477 = vadd.f32 %v2341, %v2476
  %v2478 = vpop.f32.mrb[0].mxu0
  %2479 = vdwg.mxu0
  %2480 = vst [vmem:[%s15] sm:$0xff] %v2474
  %2481 = vst [vmem:[%s15 + $0x8] sm:$0xff] %v2477
  // Predicated region
  $region62: #{policy_forward.1} parent=0 // pred_check
    _
  $region63: #{policy_forward.1} parent=0 // pred_check_branch
    %2483 = sbr.rel (0) target = $region65
  $region64: #{policy_forward.1} parent=0 // pred_region
    _
  $region65: #{policy_forward.1} parent=0 // pred_fallthru
    _
  // Predicated region
  $region66: #{policy_forward.1} parent=0 // pred_check
    _
  $region67: #{policy_forward.1} parent=0 // pred_check_branch
    %2485 = sbr.rel (0) target = $region69
  $region68: #{policy_forward.1} parent=0 // pred_region
    _
  $region69: #{policy_forward.1} parent=0 // pred_fallthru
    _

</llo_original>
